<compile_context>
chip_gen: v7x
topology: tpu7x:2x2x1
jax: 0.10.0
libtpu: 0.0.40
codegen_flags: <defaults>
</compile_context>

<pallas_src>
import functools

import jax
import jax.numpy as jnp
from jax import lax
from jax.experimental import pallas as pl
from jax.experimental.pallas import tpu as pltpu


# ---------------------------------------------------------------------------
# Fused kernel: B_BLK batch elements per grid step, everything stays in VMEM /
# registers (QKV projection + per-head attention + output projection).
# ---------------------------------------------------------------------------
def _fused_attention_kernel(x_ref, w_qkv_ref, bias_ref, w_out_ref, b_out_ref,
                            o_ref, *, b_blk, n, heads, dim_head):
    inner = heads * dim_head
    rows = b_blk * n
    dim = o_ref.shape[-1]

    # qkv projection over all B_BLK batches at once -> tall bf16 MXU matmul.
    # (scale dim_head**-0.5 is already folded into the q-columns of W_qkv)
    x = x_ref[...].astype(jnp.bfloat16)                        # (rows, dim)
    qkv = jnp.dot(x, w_qkv_ref[...],
                  preferred_element_type=jnp.float32)          # (rows, 3*inner) f32

    # relative-position bias, broadcast once (hoisted out of the head loop)
    bias = jnp.broadcast_to(bias_ref[...], (b_blk, n, n))      # (b_blk, n, n) f32

    # output-projection accumulator (register resident, no VMEM scratch)
    acc = jnp.zeros((rows, dim), jnp.float32)

    for h in range(heads):                                     # small static unroll
        q = qkv[:, h * dim_head:(h + 1) * dim_head]                       # (rows, d)
        k = qkv[:, inner + h * dim_head:inner + (h + 1) * dim_head]
        v = qkv[:, 2 * inner + h * dim_head:2 * inner + (h + 1) * dim_head]

        qb = q.reshape(b_blk, n, dim_head).astype(jnp.bfloat16)
        kb = k.reshape(b_blk, n, dim_head).astype(jnp.bfloat16)
        vb = v.reshape(b_blk, n, dim_head).astype(jnp.bfloat16)

        # sim[b,i,j] = sum_d q[b,i,d] * k[b,j,d]  + bias[i,j]
        sim = lax.dot_general(qb, kb, (((2,), (2,)), ((0,), (0,))),
                              preferred_element_type=jnp.float32) + bias

        # f32 softmax with EUP approximate reciprocal for the denominator.
        m = jnp.max(sim, axis=-1, keepdims=True)
        p = jnp.exp(sim - m)
        p = p * pl.reciprocal(jnp.sum(p, axis=-1, keepdims=True), approx=True)

        # out_h[b,i,e] = sum_j p[b,i,j] * v[b,j,e]
        oh = lax.dot_general(p.astype(jnp.bfloat16), vb,
                             (((2,), (1,)), ((0,), (0,))),
                             preferred_element_type=jnp.float32)  # (b_blk, n, d)

        # fold the output projection into the head loop (no per-head scratch)
        acc = acc + jnp.dot(
            oh.reshape(rows, dim_head).astype(jnp.bfloat16),
            w_out_ref[h * dim_head:(h + 1) * dim_head, :],
            preferred_element_type=jnp.float32)

    o_ref[...] = acc + b_out_ref[...]


# ---------------------------------------------------------------------------
# Batch-block sizing
# ---------------------------------------------------------------------------
def _pick_batch_block(b, n, *, target_rows=256, min_steps=2):
    """Batches per grid step.

    Aim for ~target_rows MXU sublane rows per projection matmul, but keep at
    least `min_steps` grid steps (when possible) so ("parallel",) grid
    semantics can shard across both TensorCores on v7x; the one extra step
    costs only ~0.35 us on single-TC v5e / v6e.
    """
    want = max(1, target_rows // n)
    cap = max(1, b // min_steps)
    blk = max(1, min(want, cap))
    while b % blk:                     # grid needs an exact divisor of b
        blk -= 1
    return blk


# ---------------------------------------------------------------------------
# One-time parameter preparation (outside the per-call path)
# ---------------------------------------------------------------------------
def prepare_params(params, *, M, heads, dim_head):
    """Folds the q scale into W_qkv, gathers the relative-position bias, and
    casts MXU weight operands to bf16.  Call once, outside jit/per-call path."""
    inner = heads * dim_head
    scale = dim_head ** (-0.5)

    w_qkv = params["w_qkv"].astype(jnp.float32)
    w_qkv = w_qkv.at[:, :inner].multiply(scale)        # fold q-scale into weights

    # 1-D relative-position bias: Mat.index_select(0, B).view(M, M)
    # TODO(synk): 2-D relative-position branch (len(M) == 2) not implemented.
    idx = (jnp.arange(M).reshape(-1, 1) - jnp.arange(M).reshape(1, -1)
           + (M - 1)).reshape(-1)
    bias = params["Mat"][idx].reshape(M, M).astype(jnp.float32)

    return {
        "w_qkv": w_qkv.astype(jnp.bfloat16),            # (dim, 3*inner)
        "w_out": params["w_out"].astype(jnp.bfloat16),  # (inner, dim)
        "b_out": params["b_out"].reshape(1, -1).astype(jnp.float32),
        "bias": bias,                                   # (M, M) f32
    }


# ---------------------------------------------------------------------------
# Forward pass
# ---------------------------------------------------------------------------
def attention_forward(x, prep, *, heads, dim_head):
    b, n, dim = x.shape
    inner = heads * dim_head
    assert prep["bias"].shape == (n, n), \
        "sequence length n must equal the relative-position window M"
    assert prep["w_qkv"].shape == (dim, 3 * inner)
    assert n % 8 == 0, "window length M must be a multiple of 8 (sublanes)"

    b_blk = _pick_batch_block(b, n)
    rows = b_blk * n
    grid = (b // b_blk,)

    # Present x / y as 2-D (b*n, dim) row slabs so each grid step is one large
    # contiguous DMA instead of per-batch ~1 KiB transfers.
    x2 = x.reshape(b * n, dim)

    kernel = functools.partial(_fused_attention_kernel, b_blk=b_blk, n=n,
                               heads=heads, dim_head=dim_head)

    y2 = pl.pallas_call(
        kernel,
        out_shape=jax.ShapeDtypeStruct((b * n, dim), jnp.float32),
        grid=grid,
        in_specs=[
            pl.BlockSpec((rows, dim), lambda i: (i, 0)),          # x row block
            pl.BlockSpec((dim, 3 * inner), lambda i: (0, 0)),     # W_qkv (resident)
            pl.BlockSpec((n, n), lambda i: (0, 0)),               # bias  (resident)
            pl.BlockSpec((inner, dim), lambda i: (0, 0)),         # W_out (resident)
            pl.BlockSpec((1, dim), lambda i: (0, 0)),             # b_out (resident)
        ],
        out_specs=pl.BlockSpec((rows, dim), lambda i: (i, 0)),
        compiler_params=pltpu.CompilerParams(
            dimension_semantics=("parallel",)),
    )(x2, prep["w_qkv"], prep["bias"], prep["w_out"], prep["b_out"])

    return y2.reshape(b, n, dim)


# ---------------------------------------------------------------------------
# Deterministic parameter init + smoke test
# ---------------------------------------------------------------------------
def init_params(key, dim, heads, dim_head, M):
    inner = heads * dim_head
    k1, k2, k3, k4 = jax.random.split(key, 4)
    return {
        # stored as (in, out) so forward is x @ W  (== x @ W_pt.T in PyTorch)
        "w_qkv": jax.random.normal(k1, (dim, inner * 3), jnp.float32) * 0.05,
        "w_out": jax.random.normal(k2, (inner, dim), jnp.float32) * 0.05,
        "b_out": jax.random.normal(k3, (dim,), jnp.float32) * 0.05,
        # nn.Parameter(torch.zeros([2*M-1])) in the module; random here so the
        # bias gather path is actually exercised.
        "Mat": jax.random.normal(k4, (2 * M - 1,), jnp.float32) * 0.1,
    }


if __name__ == "__main__":
    # batch=8, seq n = M = 8 (window length), dim=32, heads=4, dim_head=16
    B_SZ, DIM, HEADS, DIM_HEAD, M = 8, 32, 4, 16, 8

    key = jax.random.PRNGKey(0)
    kx, kp = jax.random.split(key)
    x = jax.random.normal(kx, (B_SZ, M, DIM), jnp.float32)
    params = init_params(kp, DIM, HEADS, DIM_HEAD, M)

    # one-time parameter prep (scale fold, bias gather, bf16 weight cast)
    prep = prepare_params(params, M=M, heads=HEADS, dim_head=DIM_HEAD)

    fwd = jax.jit(functools.partial(attention_forward,
                                    heads=HEADS, dim_head=DIM_HEAD))
    y = fwd(x, prep)
    jax.block_until_ready(y)
    assert y.shape == (B_SZ, M, DIM)

    # reference check in plain f32 JAX against the ORIGINAL (unprepared) params
    def ref_forward(x, p):
        b, n, d = x.shape
        inner = HEADS * DIM_HEAD
        qkv = x.reshape(b * n, d) @ p["w_qkv"]
        qkv = qkv.reshape(b, n, 3, HEADS, DIM_HEAD)
        q, k, v = (qkv[:, :, i].transpose(0, 2, 1, 3).reshape(b * HEADS, n, DIM_HEAD)
                   for i in range(3))
        q = q * (DIM_HEAD ** -0.5)
        idx = (jnp.arange(M).reshape(-1, 1) - jnp.arange(M).reshape(1, -1)
               + (M - 1)).reshape(-1)
        bias = p["Mat"][idx].reshape(M, M)
        sim = jnp.einsum("bid,bjd->bij", q, k) + bias[None]
        a = jax.nn.softmax(sim, axis=-1)
        o = jnp.einsum("bij,bjd->bid", a, v)
        o = o.reshape(b, HEADS, n, DIM_HEAD).transpose(0, 2, 1, 3).reshape(b * n, inner)
        return (o @ p["w_out"] + p["b_out"]).reshape(b, n, d)

    y_ref = ref_forward(x, params)
    # tolerance relaxed vs strict f32 because MXU operands are bf16 and the
    # softmax denominator uses the approximate EUP reciprocal; errors stay at
    # the ~1e-3 level while real bugs (head/indexing mistakes) are O(1e-1).
    assert jnp.allclose(y, y_ref, atol=1e-2, rtol=1e-2), "mismatch vs reference"

    print("KERNEL_OK")
</pallas_src>

<mosaic_0001>
module attributes {stable_mosaic.version = 11 : i64} {
  func.func @_fused_attention_kernel(%arg0: i32, %arg1: memref<32x32xf32, #tpu.memory_space<vmem>>, %arg2: memref<32x192xbf16, #tpu.memory_space<vmem>>, %arg3: memref<8x8xf32, #tpu.memory_space<vmem>>, %arg4: memref<64x32xbf16, #tpu.memory_space<vmem>>, %arg5: memref<1x32xf32, #tpu.memory_space<vmem>>, %arg6: memref<32x32xf32, #tpu.memory_space<vmem>>) attributes {dimension_semantics = [#tpu.dimension_semantics<parallel>], iteration_bounds = array<i64: 2>, scalar_prefetch = 0 : i64, scratch_operands = 0 : i64, tpu.core_type = #tpu.core_type<tc>, window_params = [{transform_indices = @transform_0, window_bounds = array<i64: 32, 32>}, {pipeline_mode = #tpu.pipeline_mode<synchronous>, transform_indices = @transform_1, window_bounds = array<i64: 32, 192>}, {pipeline_mode = #tpu.pipeline_mode<synchronous>, transform_indices = @transform_2, window_bounds = array<i64: 8, 8>}, {pipeline_mode = #tpu.pipeline_mode<synchronous>, transform_indices = @transform_3, window_bounds = array<i64: 64, 32>}, {pipeline_mode = #tpu.pipeline_mode<synchronous>, transform_indices = @transform_4, window_bounds = array<i64: 1, 32>}, {transform_indices = @transform_5, window_bounds = array<i64: 32, 32>}]} {
    %c0 = arith.constant 0 : index
    %c0_0 = arith.constant 0 : index
    %0 = vector.load %arg1[%c0, %c0_0] : memref<32x32xf32, #tpu.memory_space<vmem>>, vector<32x32xf32>
    %1 = arith.truncf %0 : vector<32x32xf32> to vector<32x32xbf16>
    %c0_1 = arith.constant 0 : index
    %c0_2 = arith.constant 0 : index
    %2 = vector.load %arg2[%c0_1, %c0_2] : memref<32x192xbf16, #tpu.memory_space<vmem>>, vector<32x192xbf16>
    %cst = arith.constant dense<0.000000e+00> : vector<32x192xf32>
    %3 = tpu.matmul %1, %2, %cst {dimension_numbers = #tpu.dot_dimension_numbers<[1], [0], [0], [1], [0, 0, 1, 1], [], []>} : vector<32x32xbf16>, vector<32x192xbf16>, vector<32x192xf32> -> vector<32x192xf32>
    %c0_3 = arith.constant 0 : index
    %c0_4 = arith.constant 0 : index
    %4 = vector.load %arg3[%c0_3, %c0_4] : memref<8x8xf32, #tpu.memory_space<vmem>>, vector<8x8xf32>
    %5 = vector.shape_cast %4 : vector<8x8xf32> to vector<1x8x8xf32>
    %6 = vector.broadcast %5 : vector<1x8x8xf32> to vector<4x8x8xf32>
    %cst_5 = arith.constant 0.000000e+00 : f32
    %7 = vector.broadcast %cst_5 : f32 to vector<32x32xf32>
    %8 = vector.extract_strided_slice %3 {offsets = [0, 0], sizes = [32, 16], strides = [1, 1]} : vector<32x192xf32> to vector<32x16xf32>
    %9 = vector.extract_strided_slice %3 {offsets = [0, 64], sizes = [32, 16], strides = [1, 1]} : vector<32x192xf32> to vector<32x16xf32>
    %10 = vector.extract_strided_slice %3 {offsets = [0, 128], sizes = [32, 16], strides = [1, 1]} : vector<32x192xf32> to vector<32x16xf32>
    %11 = vector.shape_cast %8 : vector<32x16xf32> to vector<4x8x16xf32>
    %12 = arith.truncf %11 : vector<4x8x16xf32> to vector<4x8x16xbf16>
    %13 = vector.shape_cast %9 : vector<32x16xf32> to vector<4x8x16xf32>
    %14 = arith.truncf %13 : vector<4x8x16xf32> to vector<4x8x16xbf16>
    %15 = vector.shape_cast %10 : vector<32x16xf32> to vector<4x8x16xf32>
    %16 = arith.truncf %15 : vector<4x8x16xf32> to vector<4x8x16xbf16>
    %cst_6 = arith.constant dense<0.000000e+00> : vector<4x8x8xf32>
    %17 = tpu.matmul %12, %14, %cst_6 {dimension_numbers = #tpu.dot_dimension_numbers<[2], [2], [1], [1], [0, 0, 0, 1, 1, 1], [0], [0]>} : vector<4x8x16xbf16>, vector<4x8x16xbf16>, vector<4x8x8xf32> -> vector<4x8x8xf32>
    %18 = arith.addf %17, %6 : vector<4x8x8xf32>
    %cst_7 = arith.constant dense<0xFF800000> : vector<4x8xf32>
    %19 = vector.multi_reduction <maximumf>, %18, %cst_7 [2] : vector<4x8x8xf32> to vector<4x8xf32>
    %20 = vector.shape_cast %19 : vector<4x8xf32> to vector<4x8x1xf32>
    %21 = vector.broadcast %20 : vector<4x8x1xf32> to vector<4x8x8xf32>
    %22 = arith.subf %18, %21 : vector<4x8x8xf32>
    %23 = math.exp %22 : vector<4x8x8xf32>
    %cst_8 = arith.constant dense<0.000000e+00> : vector<4x8xf32>
    %24 = vector.multi_reduction <add>, %23, %cst_8 [2] : vector<4x8x8xf32> to vector<4x8xf32>
    %25 = vector.shape_cast %24 : vector<4x8xf32> to vector<4x8x1xf32>
    %26 = tpu.reciprocal %25 {approx = true} : vector<4x8x1xf32> -> vector<4x8x1xf32>
    %27 = vector.broadcast %26 : vector<4x8x1xf32> to vector<4x8x8xf32>
    %28 = arith.mulf %23, %27 : vector<4x8x8xf32>
    %29 = arith.truncf %28 : vector<4x8x8xf32> to vector<4x8x8xbf16>
    %cst_9 = arith.constant dense<0.000000e+00> : vector<4x8x16xf32>
    %30 = tpu.matmul %29, %16, %cst_9 {dimension_numbers = #tpu.dot_dimension_numbers<[2], [1], [1], [2], [0, 0, 0, 1, 1, 2], [0], [0]>} : vector<4x8x8xbf16>, vector<4x8x16xbf16>, vector<4x8x16xf32> -> vector<4x8x16xf32>
    %31 = vector.shape_cast %30 : vector<4x8x16xf32> to vector<32x16xf32>
    %32 = arith.truncf %31 : vector<32x16xf32> to vector<32x16xbf16>
    %c0_10 = arith.constant 0 : index
    %c0_11 = arith.constant 0 : index
    %33 = vector.load %arg4[%c0_10, %c0_11] : memref<64x32xbf16, #tpu.memory_space<vmem>>, vector<16x32xbf16>
    %cst_12 = arith.constant dense<0.000000e+00> : vector<32x32xf32>
    %34 = tpu.matmul %32, %33, %cst_12 {dimension_numbers = #tpu.dot_dimension_numbers<[1], [0], [0], [1], [0, 0, 1, 1], [], []>} : vector<32x16xbf16>, vector<16x32xbf16>, vector<32x32xf32> -> vector<32x32xf32>
    %35 = arith.addf %7, %34 : vector<32x32xf32>
    %36 = vector.extract_strided_slice %3 {offsets = [0, 16], sizes = [32, 16], strides = [1, 1]} : vector<32x192xf32> to vector<32x16xf32>
    %37 = vector.extract_strided_slice %3 {offsets = [0, 80], sizes = [32, 16], strides = [1, 1]} : vector<32x192xf32> to vector<32x16xf32>
    %38 = vector.extract_strided_slice %3 {offsets = [0, 144], sizes = [32, 16], strides = [1, 1]} : vector<32x192xf32> to vector<32x16xf32>
    %39 = vector.shape_cast %36 : vector<32x16xf32> to vector<4x8x16xf32>
    %40 = arith.truncf %39 : vector<4x8x16xf32> to vector<4x8x16xbf16>
    %41 = vector.shape_cast %37 : vector<32x16xf32> to vector<4x8x16xf32>
    %42 = arith.truncf %41 : vector<4x8x16xf32> to vector<4x8x16xbf16>
    %43 = vector.shape_cast %38 : vector<32x16xf32> to vector<4x8x16xf32>
    %44 = arith.truncf %43 : vector<4x8x16xf32> to vector<4x8x16xbf16>
    %cst_13 = arith.constant dense<0.000000e+00> : vector<4x8x8xf32>
    %45 = tpu.matmul %40, %42, %cst_13 {dimension_numbers = #tpu.dot_dimension_numbers<[2], [2], [1], [1], [0, 0, 0, 1, 1, 1], [0], [0]>} : vector<4x8x16xbf16>, vector<4x8x16xbf16>, vector<4x8x8xf32> -> vector<4x8x8xf32>
    %46 = arith.addf %45, %6 : vector<4x8x8xf32>
    %cst_14 = arith.constant dense<0xFF800000> : vector<4x8xf32>
    %47 = vector.multi_reduction <maximumf>, %46, %cst_14 [2] : vector<4x8x8xf32> to vector<4x8xf32>
    %48 = vector.shape_cast %47 : vector<4x8xf32> to vector<4x8x1xf32>
    %49 = vector.broadcast %48 : vector<4x8x1xf32> to vector<4x8x8xf32>
    %50 = arith.subf %46, %49 : vector<4x8x8xf32>
    %51 = math.exp %50 : vector<4x8x8xf32>
    %cst_15 = arith.constant dense<0.000000e+00> : vector<4x8xf32>
    %52 = vector.multi_reduction <add>, %51, %cst_15 [2] : vector<4x8x8xf32> to vector<4x8xf32>
    %53 = vector.shape_cast %52 : vector<4x8xf32> to vector<4x8x1xf32>
    %54 = tpu.reciprocal %53 {approx = true} : vector<4x8x1xf32> -> vector<4x8x1xf32>
    %55 = vector.broadcast %54 : vector<4x8x1xf32> to vector<4x8x8xf32>
    %56 = arith.mulf %51, %55 : vector<4x8x8xf32>
    %57 = arith.truncf %56 : vector<4x8x8xf32> to vector<4x8x8xbf16>
    %cst_16 = arith.constant dense<0.000000e+00> : vector<4x8x16xf32>
    %58 = tpu.matmul %57, %44, %cst_16 {dimension_numbers = #tpu.dot_dimension_numbers<[2], [1], [1], [2], [0, 0, 0, 1, 1, 2], [0], [0]>} : vector<4x8x8xbf16>, vector<4x8x16xbf16>, vector<4x8x16xf32> -> vector<4x8x16xf32>
    %59 = vector.shape_cast %58 : vector<4x8x16xf32> to vector<32x16xf32>
    %60 = arith.truncf %59 : vector<32x16xf32> to vector<32x16xbf16>
    %c16 = arith.constant 16 : index
    %c0_17 = arith.constant 0 : index
    %61 = vector.load %arg4[%c16, %c0_17] : memref<64x32xbf16, #tpu.memory_space<vmem>>, vector<16x32xbf16>
    %cst_18 = arith.constant dense<0.000000e+00> : vector<32x32xf32>
    %62 = tpu.matmul %60, %61, %cst_18 {dimension_numbers = #tpu.dot_dimension_numbers<[1], [0], [0], [1], [0, 0, 1, 1], [], []>} : vector<32x16xbf16>, vector<16x32xbf16>, vector<32x32xf32> -> vector<32x32xf32>
    %63 = arith.addf %35, %62 : vector<32x32xf32>
    %64 = vector.extract_strided_slice %3 {offsets = [0, 32], sizes = [32, 16], strides = [1, 1]} : vector<32x192xf32> to vector<32x16xf32>
    %65 = vector.extract_strided_slice %3 {offsets = [0, 96], sizes = [32, 16], strides = [1, 1]} : vector<32x192xf32> to vector<32x16xf32>
    %66 = vector.extract_strided_slice %3 {offsets = [0, 160], sizes = [32, 16], strides = [1, 1]} : vector<32x192xf32> to vector<32x16xf32>
    %67 = vector.shape_cast %64 : vector<32x16xf32> to vector<4x8x16xf32>
    %68 = arith.truncf %67 : vector<4x8x16xf32> to vector<4x8x16xbf16>
    %69 = vector.shape_cast %65 : vector<32x16xf32> to vector<4x8x16xf32>
    %70 = arith.truncf %69 : vector<4x8x16xf32> to vector<4x8x16xbf16>
    %71 = vector.shape_cast %66 : vector<32x16xf32> to vector<4x8x16xf32>
    %72 = arith.truncf %71 : vector<4x8x16xf32> to vector<4x8x16xbf16>
    %cst_19 = arith.constant dense<0.000000e+00> : vector<4x8x8xf32>
    %73 = tpu.matmul %68, %70, %cst_19 {dimension_numbers = #tpu.dot_dimension_numbers<[2], [2], [1], [1], [0, 0, 0, 1, 1, 1], [0], [0]>} : vector<4x8x16xbf16>, vector<4x8x16xbf16>, vector<4x8x8xf32> -> vector<4x8x8xf32>
    %74 = arith.addf %73, %6 : vector<4x8x8xf32>
    %cst_20 = arith.constant dense<0xFF800000> : vector<4x8xf32>
    %75 = vector.multi_reduction <maximumf>, %74, %cst_20 [2] : vector<4x8x8xf32> to vector<4x8xf32>
    %76 = vector.shape_cast %75 : vector<4x8xf32> to vector<4x8x1xf32>
    %77 = vector.broadcast %76 : vector<4x8x1xf32> to vector<4x8x8xf32>
    %78 = arith.subf %74, %77 : vector<4x8x8xf32>
    %79 = math.exp %78 : vector<4x8x8xf32>
    %cst_21 = arith.constant dense<0.000000e+00> : vector<4x8xf32>
    %80 = vector.multi_reduction <add>, %79, %cst_21 [2] : vector<4x8x8xf32> to vector<4x8xf32>
    %81 = vector.shape_cast %80 : vector<4x8xf32> to vector<4x8x1xf32>
    %82 = tpu.reciprocal %81 {approx = true} : vector<4x8x1xf32> -> vector<4x8x1xf32>
    %83 = vector.broadcast %82 : vector<4x8x1xf32> to vector<4x8x8xf32>
    %84 = arith.mulf %79, %83 : vector<4x8x8xf32>
    %85 = arith.truncf %84 : vector<4x8x8xf32> to vector<4x8x8xbf16>
    %cst_22 = arith.constant dense<0.000000e+00> : vector<4x8x16xf32>
    %86 = tpu.matmul %85, %72, %cst_22 {dimension_numbers = #tpu.dot_dimension_numbers<[2], [1], [1], [2], [0, 0, 0, 1, 1, 2], [0], [0]>} : vector<4x8x8xbf16>, vector<4x8x16xbf16>, vector<4x8x16xf32> -> vector<4x8x16xf32>
    %87 = vector.shape_cast %86 : vector<4x8x16xf32> to vector<32x16xf32>
    %88 = arith.truncf %87 : vector<32x16xf32> to vector<32x16xbf16>
    %c32 = arith.constant 32 : index
    %c0_23 = arith.constant 0 : index
    %89 = vector.load %arg4[%c32, %c0_23] : memref<64x32xbf16, #tpu.memory_space<vmem>>, vector<16x32xbf16>
    %cst_24 = arith.constant dense<0.000000e+00> : vector<32x32xf32>
    %90 = tpu.matmul %88, %89, %cst_24 {dimension_numbers = #tpu.dot_dimension_numbers<[1], [0], [0], [1], [0, 0, 1, 1], [], []>} : vector<32x16xbf16>, vector<16x32xbf16>, vector<32x32xf32> -> vector<32x32xf32>
    %91 = arith.addf %63, %90 : vector<32x32xf32>
    %92 = vector.extract_strided_slice %3 {offsets = [0, 48], sizes = [32, 16], strides = [1, 1]} : vector<32x192xf32> to vector<32x16xf32>
    %93 = vector.extract_strided_slice %3 {offsets = [0, 112], sizes = [32, 16], strides = [1, 1]} : vector<32x192xf32> to vector<32x16xf32>
    %94 = vector.extract_strided_slice %3 {offsets = [0, 176], sizes = [32, 16], strides = [1, 1]} : vector<32x192xf32> to vector<32x16xf32>
    %95 = vector.shape_cast %92 : vector<32x16xf32> to vector<4x8x16xf32>
    %96 = arith.truncf %95 : vector<4x8x16xf32> to vector<4x8x16xbf16>
    %97 = vector.shape_cast %93 : vector<32x16xf32> to vector<4x8x16xf32>
    %98 = arith.truncf %97 : vector<4x8x16xf32> to vector<4x8x16xbf16>
    %99 = vector.shape_cast %94 : vector<32x16xf32> to vector<4x8x16xf32>
    %100 = arith.truncf %99 : vector<4x8x16xf32> to vector<4x8x16xbf16>
    %cst_25 = arith.constant dense<0.000000e+00> : vector<4x8x8xf32>
    %101 = tpu.matmul %96, %98, %cst_25 {dimension_numbers = #tpu.dot_dimension_numbers<[2], [2], [1], [1], [0, 0, 0, 1, 1, 1], [0], [0]>} : vector<4x8x16xbf16>, vector<4x8x16xbf16>, vector<4x8x8xf32> -> vector<4x8x8xf32>
    %102 = arith.addf %101, %6 : vector<4x8x8xf32>
    %cst_26 = arith.constant dense<0xFF800000> : vector<4x8xf32>
    %103 = vector.multi_reduction <maximumf>, %102, %cst_26 [2] : vector<4x8x8xf32> to vector<4x8xf32>
    %104 = vector.shape_cast %103 : vector<4x8xf32> to vector<4x8x1xf32>
    %105 = vector.broadcast %104 : vector<4x8x1xf32> to vector<4x8x8xf32>
    %106 = arith.subf %102, %105 : vector<4x8x8xf32>
    %107 = math.exp %106 : vector<4x8x8xf32>
    %cst_27 = arith.constant dense<0.000000e+00> : vector<4x8xf32>
    %108 = vector.multi_reduction <add>, %107, %cst_27 [2] : vector<4x8x8xf32> to vector<4x8xf32>
    %109 = vector.shape_cast %108 : vector<4x8xf32> to vector<4x8x1xf32>
    %110 = tpu.reciprocal %109 {approx = true} : vector<4x8x1xf32> -> vector<4x8x1xf32>
    %111 = vector.broadcast %110 : vector<4x8x1xf32> to vector<4x8x8xf32>
    %112 = arith.mulf %107, %111 : vector<4x8x8xf32>
    %113 = arith.truncf %112 : vector<4x8x8xf32> to vector<4x8x8xbf16>
    %cst_28 = arith.constant dense<0.000000e+00> : vector<4x8x16xf32>
    %114 = tpu.matmul %113, %100, %cst_28 {dimension_numbers = #tpu.dot_dimension_numbers<[2], [1], [1], [2], [0, 0, 0, 1, 1, 2], [0], [0]>} : vector<4x8x8xbf16>, vector<4x8x16xbf16>, vector<4x8x16xf32> -> vector<4x8x16xf32>
    %115 = vector.shape_cast %114 : vector<4x8x16xf32> to vector<32x16xf32>
    %116 = arith.truncf %115 : vector<32x16xf32> to vector<32x16xbf16>
    %c48 = arith.constant 48 : index
    %c0_29 = arith.constant 0 : index
    %117 = vector.load %arg4[%c48, %c0_29] : memref<64x32xbf16, #tpu.memory_space<vmem>>, vector<16x32xbf16>
    %cst_30 = arith.constant dense<0.000000e+00> : vector<32x32xf32>
    %118 = tpu.matmul %116, %117, %cst_30 {dimension_numbers = #tpu.dot_dimension_numbers<[1], [0], [0], [1], [0, 0, 1, 1], [], []>} : vector<32x16xbf16>, vector<16x32xbf16>, vector<32x32xf32> -> vector<32x32xf32>
    %119 = arith.addf %91, %118 : vector<32x32xf32>
    %c0_31 = arith.constant 0 : index
    %c0_32 = arith.constant 0 : index
    %120 = vector.load %arg5[%c0_31, %c0_32] : memref<1x32xf32, #tpu.memory_space<vmem>>, vector<1x32xf32>
    %121 = vector.broadcast %120 : vector<1x32xf32> to vector<32x32xf32>
    %122 = arith.addf %119, %121 : vector<32x32xf32>
    %c0_33 = arith.constant 0 : index
    %c0_34 = arith.constant 0 : index
    %123 = vector.load %arg6[%c0_33, %c0_34] : memref<32x32xf32, #tpu.memory_space<vmem>>, vector<32x32xf32>
    tpu.vector_store %arg6[%c0_33, %c0_34], %122 {strides = array<i32>} : memref<32x32xf32, #tpu.memory_space<vmem>>, vector<32x32xf32>,
    return
  }
  func.func @transform_0(%arg0: i32) -> (i32, i32) {
    %c0_i32 = arith.constant 0 : i32
    %c0_i32_0 = arith.constant 0 : i32
    return %arg0, %c0_i32 : i32, i32
  }
  func.func @transform_1(%arg0: i32) -> (i32, i32) {
    %c0_i32 = arith.constant 0 : i32
    %c0_i32_0 = arith.constant 0 : i32
    %c0_i32_1 = arith.constant 0 : i32
    return %c0_i32, %c0_i32_0 : i32, i32
  }
  func.func @transform_2(%arg0: i32) -> (i32, i32) {
    %c0_i32 = arith.constant 0 : i32
    %c0_i32_0 = arith.constant 0 : i32
    %c0_i32_1 = arith.constant 0 : i32
    return %c0_i32, %c0_i32_0 : i32, i32
  }
  func.func @transform_3(%arg0: i32) -> (i32, i32) {
    %c0_i32 = arith.constant 0 : i32
    %c0_i32_0 = arith.constant 0 : i32
    %c0_i32_1 = arith.constant 0 : i32
    return %c0_i32, %c0_i32_0 : i32, i32
  }
  func.func @transform_4(%arg0: i32) -> (i32, i32) {
    %c0_i32 = arith.constant 0 : i32
    %c0_i32_0 = arith.constant 0 : i32
    %c0_i32_1 = arith.constant 0 : i32
    return %c0_i32, %c0_i32_0 : i32, i32
  }
  func.func @transform_5(%arg0: i32) -> (i32, i32) {
    %c0_i32 = arith.constant 0 : i32
    %c0_i32_0 = arith.constant 0 : i32
    return %arg0, %c0_i32 : i32, i32
  }
}

</mosaic_0001>

<llo_original>
// kernel: attention_forward.1
$region0: #{attention_forward.1}
  #allocation0 [shape = 'u32[]', space=smem, size = 0x4, offset = 0x4, fixed_abs, tag = 'smem constant byte address 0x4 - core index']
  #allocation1 [shape = 'u32[144,128]{1,0:T(1,128)}', space=vmem, size = 0x12000, scoped, tag = 'internal scratch']
  %s0 = inlined_call_operand.hbm [shape: f32[64,32], index: 0, kind: input, shape index: {}]
  %s1 = inlined_call_operand.vmem [shape: bf16[32,192], index: 1, kind: input, shape index: {}]
  %s2 = inlined_call_operand.vmem [shape: f32[8,8], index: 2, kind: input, shape index: {}]
  %s3 = inlined_call_operand.vmem [shape: bf16[64,32], index: 3, kind: input, shape index: {}]
  %s4 = inlined_call_operand.vmem [shape: f32[1,32], index: 4, kind: input, shape index: {}]
  %s5 = inlined_call_operand.hbm [shape: f32[64,32], index: 5, kind: output, shape index: {}]
  %s6 = sld [smem:[#allocation0]]
  $region57: #{attention_forward.1} parent=0
    _
  %s8 = ssub.s32 1, %s6
  %s9 = scalar_select 0, %s8, %s6
  $region1: #{attention_forward.1} parent=0
    #allocation2 [shape = 'u8[32768]{0}', space=vmem, size = 0x8000, scoped, tag = 'input window, operand 0']
    #allocation3 [shape = 's32[2]{0}', space=sflag, size = 0x8, scoped, tag = 'scoped memory for attention_forward.1']
    #allocation4 [shape = 's32[2]{0}', space=sflag, size = 0x8, scoped, tag = 'scoped memory for attention_forward.1']
    #allocation5 [shape = 'u8[32768]{0}', space=vmem, size = 0x8000, scoped, tag = 'output window, operand 0']
    %10 = vsyncpa [#allocation3], 0
    %s11 = scalar_lea.sflag [#allocation3], 1
    %12 = vsyncpa %s11, 0
    %13 = vsyncpa [#allocation4], 0
    %s14 = scalar_lea.sflag [#allocation4], 1
    %15 = vsyncpa %s14, 0
    loop: start=0, step=1, limit=4
    $region2: #{attention_forward.1} parent=1 // loop_pre_header
      _
    $region3: #{attention_forward.1} parent=1 // loop_header
      %s17 = sphi 0, %s21
      %p18 = scmp.ge.s32.totalorder %s17, 4
      %s27 = sphi 0, %s29
      %s30 = sphi 0, %s27
      %s31 = sphi 0, %s30
      %s47 = sphi 0, %s31
      %s51 = sphi 0, %s51
      %s53 = sphi 0, %s51
      %s54 = sphi 0, %s53
      %s68 = sphi 0, %s54
      %s72 = sphi 0, %s72
      %s74 = sphi 0, %s72
      %s75 = sphi 0, %s74
      %s89 = sphi 0, %s75
      %s93 = sphi 0, %s93
      %s95 = sphi 0, %s93
      %s96 = sphi 0, %s95
      %s110 = sphi 0, %s96
      %s114 = sphi 0, %s114
      %s116 = sphi 0, %s114
      %s117 = sphi 0, %s116
      %s131 = sphi 0, %s117
      %s137 = sphi 0, %s139
      %s140 = sphi 0, %s137
      %s141 = sphi 0, %s140
      %s157 = sphi 0, %s141
    $region4: #{attention_forward.1} parent=1 // loop_header_branch
      %20 = sbr.rel (%p18) target = $region8
    $region5: #{attention_forward.1} parent=1 // loop_body
      %s22 = ssub.s32 %s17, 1
      %s23 = ssub.s32 %s17, 2
      %s24 = sadd.s32 %s17, 1
      %s25 = ssub.s32 %s17, %s24
      %p26 = scmp.eq.s32.totalorder %s25, 0
      %s28 = sadd.s32 %s27, 1
      %s29 = scalar_select %p26, %s27, %s28
      %p32 = pneg %p26
      %p33 = scmp.eq.s32.totalorder %s17, 1
      %p34 = por %p32, %p33
      %p35 = scmp.ne.s32.totalorder %s27, %s30
      %p36 = scmp.eq.s32.totalorder %s17, 0
      %p37 = por %p35, %p36
      %p38 = scmp.ne.s32.totalorder %s27, %s30
      %p39 = scmp.eq.s32.totalorder %s22, 1
      %p40 = por %p38, %p39
      %p41 = scmp.ne.s32.totalorder %s30, %s31
      %p42 = scmp.eq.s32.totalorder %s22, 0
      %p43 = por %p41, %p42
      %p44 = scmp.ne.s32.totalorder %s30, %s31
      %p45 = scmp.eq.s32.totalorder %s23, 1
      %p46 = por %p44, %p45
      %p48 = scmp.ne.s32.totalorder %s31, %s47
      %p49 = scmp.eq.s32.totalorder %s23, 0
      %p50 = por %p48, %p49
      %s52 = sadd.s32 %s51, 1
      %p55 = scmp.eq.s32.totalorder %s17, 1
      %p56 = scmp.ne.s32.totalorder %s51, %s53
      %p57 = scmp.eq.s32.totalorder %s17, 0
      %p58 = por %p56, %p57
      %p59 = scmp.ne.s32.totalorder %s51, %s53
      %p60 = scmp.eq.s32.totalorder %s22, 1
      %p61 = por %p59, %p60
      %p62 = scmp.ne.s32.totalorder %s53, %s54
      %p63 = scmp.eq.s32.totalorder %s22, 0
      %p64 = por %p62, %p63
      %p65 = scmp.ne.s32.totalorder %s53, %s54
      %p66 = scmp.eq.s32.totalorder %s23, 1
      %p67 = por %p65, %p66
      %p69 = scmp.ne.s32.totalorder %s54, %s68
      %p70 = scmp.eq.s32.totalorder %s23, 0
      %p71 = por %p69, %p70
      %s73 = sadd.s32 %s72, 1
      %p76 = scmp.eq.s32.totalorder %s17, 1
      %p77 = scmp.ne.s32.totalorder %s72, %s74
      %p78 = scmp.eq.s32.totalorder %s17, 0
      %p79 = por %p77, %p78
      %p80 = scmp.ne.s32.totalorder %s72, %s74
      %p81 = scmp.eq.s32.totalorder %s22, 1
      %p82 = por %p80, %p81
      %p83 = scmp.ne.s32.totalorder %s74, %s75
      %p84 = scmp.eq.s32.totalorder %s22, 0
      %p85 = por %p83, %p84
      %p86 = scmp.ne.s32.totalorder %s74, %s75
      %p87 = scmp.eq.s32.totalorder %s23, 1
      %p88 = por %p86, %p87
      %p90 = scmp.ne.s32.totalorder %s75, %s89
      %p91 = scmp.eq.s32.totalorder %s23, 0
      %p92 = por %p90, %p91
      %s94 = sadd.s32 %s93, 1
      %p97 = scmp.eq.s32.totalorder %s17, 1
      %p98 = scmp.ne.s32.totalorder %s93, %s95
      %p99 = scmp.eq.s32.totalorder %s17, 0
      %p100 = por %p98, %p99
      %p101 = scmp.ne.s32.totalorder %s93, %s95
      %p102 = scmp.eq.s32.totalorder %s22, 1
      %p103 = por %p101, %p102
      %p104 = scmp.ne.s32.totalorder %s95, %s96
      %p105 = scmp.eq.s32.totalorder %s22, 0
      %p106 = por %p104, %p105
      %p107 = scmp.ne.s32.totalorder %s95, %s96
      %p108 = scmp.eq.s32.totalorder %s23, 1
      %p109 = por %p107, %p108
      %p111 = scmp.ne.s32.totalorder %s96, %s110
      %p112 = scmp.eq.s32.totalorder %s23, 0
      %p113 = por %p111, %p112
      %s115 = sadd.s32 %s114, 1
      %p118 = scmp.eq.s32.totalorder %s17, 1
      %p119 = scmp.ne.s32.totalorder %s114, %s116
      %p120 = scmp.eq.s32.totalorder %s17, 0
      %p121 = por %p119, %p120
      %p122 = scmp.ne.s32.totalorder %s114, %s116
      %p123 = scmp.eq.s32.totalorder %s22, 1
      %p124 = por %p122, %p123
      %p125 = scmp.ne.s32.totalorder %s116, %s117
      %p126 = scmp.eq.s32.totalorder %s22, 0
      %p127 = por %p125, %p126
      %p128 = scmp.ne.s32.totalorder %s116, %s117
      %p129 = scmp.eq.s32.totalorder %s23, 1
      %p130 = por %p128, %p129
      %p132 = scmp.ne.s32.totalorder %s117, %s131
      %p133 = scmp.eq.s32.totalorder %s23, 0
      %p134 = por %p132, %p133
      %s135 = ssub.s32 %s17, %s24
      %p136 = scmp.eq.s32.totalorder %s135, 0
      %s138 = sadd.s32 %s137, 1
      %s139 = scalar_select %p136, %s137, %s138
      %p142 = pneg %p136
      %p143 = scmp.eq.s32.totalorder %s17, 1
      %p144 = por %p142, %p143
      %p145 = scmp.ne.s32.totalorder %s137, %s140
      %p146 = scmp.eq.s32.totalorder %s17, 0
      %p147 = por %p145, %p146
      %p148 = scmp.ne.s32.totalorder %s137, %s140
      %p149 = scmp.eq.s32.totalorder %s22, 1
      %p150 = por %p148, %p149
      %p151 = scmp.ne.s32.totalorder %s140, %s141
      %p152 = scmp.eq.s32.totalorder %s22, 0
      %p153 = por %p151, %p152
      %p154 = scmp.ne.s32.totalorder %s140, %s141
      %p155 = scmp.eq.s32.totalorder %s23, 1
      %p156 = por %p154, %p155
      %p158 = scmp.ne.s32.totalorder %s141, %s157
      %p159 = scmp.eq.s32.totalorder %s23, 0
      %p160 = por %p158, %p159
      %p161 = scmp.le.s32.totalorder 1, %s17
      %p162 = scmp.lt.s32.totalorder %s17, 3
      %p163 = pnand %p161, %p162
      %p164 = pneg %p163
      // Predicated region
      $region9: #{attention_forward.1} parent=5 // pred_check
        _
      $region10: #{attention_forward.1} parent=5 // pred_check_branch
        %166 = sbr.rel (%p163) target = $region12
      $region11: #{attention_forward.1} parent=5 // pred_region
        %s167 = ssub.s32 %s17, 1
        // Predicated region
        $region13: #{attention_forward.1} parent=11 // pred_check
          %p168 = pneg %p64
        $region14: #{attention_forward.1} parent=11 // pred_check_branch
          %170 = sbr.rel (%p168) target = $region16
        $region15: #{attention_forward.1} parent=11 // pred_region
          _
        $region16: #{attention_forward.1} parent=11 // pred_fallthru
          _
        // Predicated region
        $region17: #{attention_forward.1} parent=11 // pred_check
          %p171 = pneg %p85
        $region18: #{attention_forward.1} parent=11 // pred_check_branch
          %173 = sbr.rel (%p171) target = $region20
        $region19: #{attention_forward.1} parent=11 // pred_region
          _
        $region20: #{attention_forward.1} parent=11 // pred_fallthru
          _
        // Predicated region
        $region21: #{attention_forward.1} parent=11 // pred_check
          %p174 = pneg %p106
        $region22: #{attention_forward.1} parent=11 // pred_check_branch
          %176 = sbr.rel (%p174) target = $region24
        $region23: #{attention_forward.1} parent=11 // pred_region
          _
        $region24: #{attention_forward.1} parent=11 // pred_fallthru
          _
        // Predicated region
        $region25: #{attention_forward.1} parent=11 // pred_check
          %p177 = pneg %p127
        $region26: #{attention_forward.1} parent=11 // pred_check_branch
          %179 = sbr.rel (%p177) target = $region28
        $region27: #{attention_forward.1} parent=11 // pred_region
          _
        $region28: #{attention_forward.1} parent=11 // pred_fallthru
          _
      $region12: #{attention_forward.1} parent=5 // pred_fallthru
        _
      %p180 = scmp.lt.s32.totalorder %s17, 2
      // Predicated region
      $region29: #{attention_forward.1} parent=5 // pred_check
        %p181 = pneg %p180
      $region30: #{attention_forward.1} parent=5 // pred_check_branch
        %183 = sbr.rel (%p181) target = $region32
      $region31: #{attention_forward.1} parent=5 // pred_region
        // Predicated region
        $region33: #{attention_forward.1} parent=31 // pred_check
          %p184 = pneg %p37
        $region34: #{attention_forward.1} parent=31 // pred_check_branch
          %186 = sbr.rel (%p184) target = $region36
        $region35: #{attention_forward.1} parent=31 // pred_region
          %s187 = sand.u32 %s27, 1
          %s188 = scalar_lea.sflag [#allocation3], %s187
          %s189 = sand.u32 %s27, 1
          %s190 = smul.addr %s189, 32
          %s191 = scalar_lea.vmem [#allocation2], %s190
          %s192 = smul.u32 4, %s17
          %s194 = ssub.s32 512, 512
          %195 = vsyncadd %s188, %s194
          %s196 = smul.addr %s192, 128
          %s197 = scalar_lea.hbm %s0, %s196
          %s198 = sshll.u32 %s191, 4
          %s199 = int_to_ptr.vmem [resolvable:$true] %s198
          %204 = dma.hbm_to_vmem [thread:$0]  %s197, 512, %s199, %s188, 128, 128, 8
        $region36: #{attention_forward.1} parent=31 // pred_fallthru
          _
      $region32: #{attention_forward.1} parent=5 // pred_fallthru
        _
      %p205 = scmp.le.s32.totalorder 1, %s17
      %p206 = scmp.lt.s32.totalorder %s17, 3
      %p207 = pnand %p205, %p206
      %p208 = pneg %p207
      // Predicated region
      $region37: #{attention_forward.1} parent=5 // pred_check
        _
      $region38: #{attention_forward.1} parent=5 // pred_check_branch
        %210 = sbr.rel (%p207) target = $region40
      $region39: #{attention_forward.1} parent=5 // pred_region
        %s211 = ssub.s32 %s17, 1
        %s212 = sand.u32 %s30, 1
        %s213 = scalar_lea.sflag [#allocation3], %s212
        %s214 = sand.u32 %s30, 1
        %s215 = smul.addr %s214, 32
        %s216 = scalar_lea.vmem [#allocation2], %s215
        // Predicated region
        $region41: #{attention_forward.1} parent=39 // pred_check
          %p217 = pneg %p43
        $region42: #{attention_forward.1} parent=39 // pred_check_branch
          %219 = sbr.rel (%p217) target = $region44
        $region43: #{attention_forward.1} parent=39 // pred_region
          %220 = dma.done %s213, 512
        $region44: #{attention_forward.1} parent=39 // pred_fallthru
          _
        %s221 = sand.u32 %s30, 1
        %s222 = scalar_lea.sflag [#allocation3], %s221
        %s223 = sand.u32 %s30, 1
        %s224 = smul.addr %s223, 32
        %s225 = scalar_lea.vmem [#allocation2], %s224
        %p226 = pneg %p43
        %p227 = pneg %p40
        %p228 = pneg %p64
        %p229 = pneg %p61
        %p230 = pneg %p85
        %p231 = pneg %p82
        %p232 = pneg %p106
        %p233 = pneg %p103
        %p234 = pneg %p127
        %p235 = pneg %p124
        %p236 = pneg %p153
        %p237 = pneg %p150
        %s238 = sand.u32 %s140, 1
        %s239 = scalar_lea.sflag [#allocation4], %s238
        %s240 = sand.u32 %s140, 1
        %s241 = smul.addr %s240, 32
        %s242 = scalar_lea.vmem [#allocation5], %s241
        %s243 = smul.u32 4, %s22
        %s244 = smul.u32 4, %s22
        %v246 = vld [vmem:[%s216] sm:$0xff]
        %v247 = vld [vmem:[%s216 + $0x8] sm:$0xff]
        %v248 = vld [vmem:[%s216 + $0x10] sm:$0xff]
        %v249 = vld [vmem:[%s216 + $0x18] sm:$0xff]
        %v250 = vpack.c.bf16 %v247, %v246
        %v251 = vpack.c.bf16 %v249, %v248
        %v252 = vld [vmem:[%s1] sm:$0xff]
        %v253 = vld [vmem:[%s1 + $0x8] sm:$0xff]
        %v254 = vld [vmem:[%s1 + $0x10] sm:$0xff]
        %v255 = vld [vmem:[%s1 + $0x18] sm:$0xff]
        %v260 = vunpack.c.l.b16 %v252
        %v261 = vunpack.c.h.b16 %v252
        %v262 = vunpack.c.l.b16 %v253
        %v263 = vunpack.c.h.b16 %v253
        %v264 = vunpack.c.l.b16 %v254
        %v265 = vunpack.c.h.b16 %v254
        %v266 = vunpack.c.l.b16 %v255
        %v267 = vunpack.c.h.b16 %v255
        %v268 = vpack.c.b16 %v262, %v260
        %v269 = vpack.c.b16 %v263, %v261
        %v270 = vpack.c.b16 %v266, %v264
        %v271 = vpack.c.b16 %v267, %v265
        %vm276 = vcmask 261120
        %v278 = vsel %vm276, %v250, 0
        %v281 = vsel %vm276, %v251, 0
        %283 = vmatprep.subr.bf16.mxu0 %v269
        %284 = vmatpush1.bf16.msra.mxu0 %v268
        %285 = vmatprep.subr.bf16.mxu0 %v271
        %286 = vmatpush1.bf16.msra.mxu0 %v270
        %287 = vmatprep.subr.bf16.mxu0 0
        %288 = vmatpush1.bf16.msra.mxu0 0
        %289 = vmatprep.subr.bf16.mxu0 0
        %290 = vmatpush1.bf16.msra.mxu0 0
        %291 = vmatprep.subr.bf16.mxu0 0
        %292 = vmatpush1.bf16.msra.mxu0 0
        %293 = vmatprep.subr.bf16.mxu0 0
        %294 = vmatpush1.bf16.msra.mxu0 0
        %295 = vmatprep.subr.bf16.mxu0 0
        %296 = vmatpush1.bf16.msra.mxu0 0
        %297 = vmatprep.subr.bf16.mxu0 0
        %298 = vmatpush1.bf16.msra.mxu0 0
        %299 = vmatprep.subr.bf16.mxu0 0
        %300 = vmatpush1.bf16.msra.mxu0 0
        %301 = vmatprep.subr.bf16.mxu0 0
        %302 = vmatpush1.bf16.msra.mxu0 0
        %303 = vmatprep.subr.bf16.mxu0 0
        %304 = vmatpush1.bf16.msra.mxu0 0
        %305 = vmatprep.subr.bf16.mxu0 0
        %306 = vmatpush1.bf16.msra.mxu0 0
        %307 = vmatprep.subr.bf16.mxu0 0
        %308 = vmatpush1.bf16.msra.mxu0 0
        %309 = vmatprep.subr.bf16.mxu0 0
        %310 = vmatpush1.bf16.msra.mxu0 0
        %311 = vmatprep.subr.bf16.mxu0 0
        %312 = vmatpush1.bf16.msra.mxu0 0
        %313 = vmatprep.subr.bf16.mxu0 0
        %314 = vmatpush1.bf16.msra.mxu0 0
        %315 = vmatprep.mubr.bf16.mxu0 0
        %316 = vmatmul.mubr.bf16.gmra.mrb[0].mxu0 %v278
        %v317 = vpop.f32.mrb[0].mxu0
        %v318 = vadd.f32 0.0, %v317
        %v319 = vpop.f32.mrb[0].mxu0
        %v320 = vadd.f32 0.0, %v319
        %v321 = vpop.f32.mrb[0].mxu0
        %v322 = vadd.f32 0.0, %v321
        %v323 = vpop.f32.mrb[0].mxu0
        %v324 = vadd.f32 0.0, %v323
        %325 = vmatprep.mubr.bf16.mxu0 0
        %326 = vmatmul.mubr.bf16.gmra.mrb[0].mxu0 %v281
        %v327 = vpop.f32.mrb[0].mxu0
        %v328 = vadd.f32 0.0, %v327
        %v329 = vpop.f32.mrb[0].mxu0
        %v330 = vadd.f32 0.0, %v329
        %v331 = vpop.f32.mrb[0].mxu0
        %v332 = vadd.f32 0.0, %v331
        %v333 = vpop.f32.mrb[0].mxu0
        %v334 = vadd.f32 0.0, %v333
        %335 = vdwg.mxu0
        %v336 = vld [vmem:[%s2] sm:$0xff]
        %v337 = vpack.c.bf16 %v318, %v318
        %v338 = vpack.c.bf16 %v322, %v322
        %v339 = vpack.c.bf16 %v328, %v328
        %v340 = vpack.c.bf16 %v332, %v332
        %v341 = vpack.c.bf16 %v320, %v320
        %v342 = vpack.c.bf16 %v324, %v324
        %v343 = vpack.c.bf16 %v330, %v330
        %v344 = vpack.c.bf16 %v334, %v334
        %346 = vrot.lane.b32.xlu0 %v337, 64
        %v347 = vpop.permute.xlu0 %346
        %vm348 = vcmask 130048
        %v350 = vsel %vm348, %v337, 0
        %v353 = vsel %vm348, %v347, 0
        %355 = vmatprep.subr.bf16.mxu0 0
        %356 = vmatpush1.bf16.xpose.msra.mxu0 %v353
        %357 = vmatprep.subr.bf16.mxu0 0
        %358 = vmatpush1.bf16.xpose.msra.mxu0 0
        %359 = vmatprep.subr.bf16.mxu0 0
        %360 = vmatpush1.bf16.xpose.msra.mxu0 0
        %361 = vmatprep.subr.bf16.mxu0 0
        %362 = vmatpush1.bf16.xpose.msra.mxu0 0
        %363 = vmatprep.subr.bf16.mxu0 0
        %364 = vmatpush1.bf16.xpose.msra.mxu0 0
        %365 = vmatprep.subr.bf16.mxu0 0
        %366 = vmatpush1.bf16.xpose.msra.mxu0 0
        %367 = vmatprep.subr.bf16.mxu0 0
        %368 = vmatpush1.bf16.xpose.msra.mxu0 0
        %369 = vmatprep.subr.bf16.mxu0 0
        %370 = vmatpush1.bf16.xpose.msra.mxu0 0
        %371 = vmatprep.subr.bf16.mxu0 0
        %372 = vmatpush1.bf16.xpose.msra.mxu0 0
        %373 = vmatprep.subr.bf16.mxu0 0
        %374 = vmatpush1.bf16.xpose.msra.mxu0 0
        %375 = vmatprep.subr.bf16.mxu0 0
        %376 = vmatpush1.bf16.xpose.msra.mxu0 0
        %377 = vmatprep.subr.bf16.mxu0 0
        %378 = vmatpush1.bf16.xpose.msra.mxu0 0
        %379 = vmatprep.subr.bf16.mxu0 0
        %380 = vmatpush1.bf16.xpose.msra.mxu0 0
        %381 = vmatprep.subr.bf16.mxu0 0
        %382 = vmatpush1.bf16.xpose.msra.mxu0 0
        %383 = vmatprep.subr.bf16.mxu0 0
        %384 = vmatpush1.bf16.xpose.msra.mxu0 0
        %385 = vmatprep.subr.bf16.mxu0 0
        %386 = vmatpush1.bf16.xpose.msra.mxu0 0
        %387 = vmatprep.mubr.bf16.mxu0 0
        %388 = vmatmul.mubr.bf16.gmra.mrb[0].mxu0 %v350
        %v389 = vpop.f32.mrb[0].mxu0
        %v390 = vadd.f32 %v336, %v389
        %v391 = vpop.f32.mrb[0].mxu0
        %v392 = vpop.f32.mrb[0].mxu0
        %v393 = vpop.f32.mrb[0].mxu0
        %394 = vdwg.mxu0
        %396 = vrot.lane.b32.xlu0 %v338, 64
        %v397 = vpop.permute.xlu0 %396
        %v399 = vsel %vm348, %v338, 0
        %v402 = vsel %vm348, %v397, 0
        %404 = vmatprep.subr.bf16.mxu0 0
        %405 = vmatpush1.bf16.xpose.msra.mxu0 %v402
        %406 = vmatprep.subr.bf16.mxu0 0
        %407 = vmatpush1.bf16.xpose.msra.mxu0 0
        %408 = vmatprep.subr.bf16.mxu0 0
        %409 = vmatpush1.bf16.xpose.msra.mxu0 0
        %410 = vmatprep.subr.bf16.mxu0 0
        %411 = vmatpush1.bf16.xpose.msra.mxu0 0
        %412 = vmatprep.subr.bf16.mxu0 0
        %413 = vmatpush1.bf16.xpose.msra.mxu0 0
        %414 = vmatprep.subr.bf16.mxu0 0
        %415 = vmatpush1.bf16.xpose.msra.mxu0 0
        %416 = vmatprep.subr.bf16.mxu0 0
        %417 = vmatpush1.bf16.xpose.msra.mxu0 0
        %418 = vmatprep.subr.bf16.mxu0 0
        %419 = vmatpush1.bf16.xpose.msra.mxu0 0
        %420 = vmatprep.subr.bf16.mxu0 0
        %421 = vmatpush1.bf16.xpose.msra.mxu0 0
        %422 = vmatprep.subr.bf16.mxu0 0
        %423 = vmatpush1.bf16.xpose.msra.mxu0 0
        %424 = vmatprep.subr.bf16.mxu0 0
        %425 = vmatpush1.bf16.xpose.msra.mxu0 0
        %426 = vmatprep.subr.bf16.mxu0 0
        %427 = vmatpush1.bf16.xpose.msra.mxu0 0
        %428 = vmatprep.subr.bf16.mxu0 0
        %429 = vmatpush1.bf16.xpose.msra.mxu0 0
        %430 = vmatprep.subr.bf16.mxu0 0
        %431 = vmatpush1.bf16.xpose.msra.mxu0 0
        %432 = vmatprep.subr.bf16.mxu0 0
        %433 = vmatpush1.bf16.xpose.msra.mxu0 0
        %434 = vmatprep.subr.bf16.mxu0 0
        %435 = vmatpush1.bf16.xpose.msra.mxu0 0
        %436 = vmatprep.mubr.bf16.mxu0 0
        %437 = vmatmul.mubr.bf16.gmra.mrb[0].mxu0 %v399
        %v438 = vpop.f32.mrb[0].mxu0
        %v439 = vadd.f32 %v336, %v438
        %v440 = vpop.f32.mrb[0].mxu0
        %v441 = vpop.f32.mrb[0].mxu0
        %v442 = vpop.f32.mrb[0].mxu0
        %443 = vdwg.mxu0
        %445 = vrot.lane.b32.xlu0 %v339, 64
        %v446 = vpop.permute.xlu0 %445
        %v448 = vsel %vm348, %v339, 0
        %v451 = vsel %vm348, %v446, 0
        %453 = vmatprep.subr.bf16.mxu0 0
        %454 = vmatpush1.bf16.xpose.msra.mxu0 %v451
        %455 = vmatprep.subr.bf16.mxu0 0
        %456 = vmatpush1.bf16.xpose.msra.mxu0 0
        %457 = vmatprep.subr.bf16.mxu0 0
        %458 = vmatpush1.bf16.xpose.msra.mxu0 0
        %459 = vmatprep.subr.bf16.mxu0 0
        %460 = vmatpush1.bf16.xpose.msra.mxu0 0
        %461 = vmatprep.subr.bf16.mxu0 0
        %462 = vmatpush1.bf16.xpose.msra.mxu0 0
        %463 = vmatprep.subr.bf16.mxu0 0
        %464 = vmatpush1.bf16.xpose.msra.mxu0 0
        %465 = vmatprep.subr.bf16.mxu0 0
        %466 = vmatpush1.bf16.xpose.msra.mxu0 0
        %467 = vmatprep.subr.bf16.mxu0 0
        %468 = vmatpush1.bf16.xpose.msra.mxu0 0
        %469 = vmatprep.subr.bf16.mxu0 0
        %470 = vmatpush1.bf16.xpose.msra.mxu0 0
        %471 = vmatprep.subr.bf16.mxu0 0
        %472 = vmatpush1.bf16.xpose.msra.mxu0 0
        %473 = vmatprep.subr.bf16.mxu0 0
        %474 = vmatpush1.bf16.xpose.msra.mxu0 0
        %475 = vmatprep.subr.bf16.mxu0 0
        %476 = vmatpush1.bf16.xpose.msra.mxu0 0
        %477 = vmatprep.subr.bf16.mxu0 0
        %478 = vmatpush1.bf16.xpose.msra.mxu0 0
        %479 = vmatprep.subr.bf16.mxu0 0
        %480 = vmatpush1.bf16.xpose.msra.mxu0 0
        %481 = vmatprep.subr.bf16.mxu0 0
        %482 = vmatpush1.bf16.xpose.msra.mxu0 0
        %483 = vmatprep.subr.bf16.mxu0 0
        %484 = vmatpush1.bf16.xpose.msra.mxu0 0
        %485 = vmatprep.mubr.bf16.mxu0 0
        %486 = vmatmul.mubr.bf16.gmra.mrb[0].mxu0 %v448
        %v487 = vpop.f32.mrb[0].mxu0
        %v488 = vadd.f32 %v336, %v487
        %v489 = vpop.f32.mrb[0].mxu0
        %v490 = vpop.f32.mrb[0].mxu0
        %v491 = vpop.f32.mrb[0].mxu0
        %492 = vdwg.mxu0
        %494 = vrot.lane.b32.xlu0 %v340, 64
        %v495 = vpop.permute.xlu0 %494
        %v497 = vsel %vm348, %v340, 0
        %v500 = vsel %vm348, %v495, 0
        %502 = vmatprep.subr.bf16.mxu0 0
        %503 = vmatpush1.bf16.xpose.msra.mxu0 %v500
        %504 = vmatprep.subr.bf16.mxu0 0
        %505 = vmatpush1.bf16.xpose.msra.mxu0 0
        %506 = vmatprep.subr.bf16.mxu0 0
        %507 = vmatpush1.bf16.xpose.msra.mxu0 0
        %508 = vmatprep.subr.bf16.mxu0 0
        %509 = vmatpush1.bf16.xpose.msra.mxu0 0
        %510 = vmatprep.subr.bf16.mxu0 0
        %511 = vmatpush1.bf16.xpose.msra.mxu0 0
        %512 = vmatprep.subr.bf16.mxu0 0
        %513 = vmatpush1.bf16.xpose.msra.mxu0 0
        %514 = vmatprep.subr.bf16.mxu0 0
        %515 = vmatpush1.bf16.xpose.msra.mxu0 0
        %516 = vmatprep.subr.bf16.mxu0 0
        %517 = vmatpush1.bf16.xpose.msra.mxu0 0
        %518 = vmatprep.subr.bf16.mxu0 0
        %519 = vmatpush1.bf16.xpose.msra.mxu0 0
        %520 = vmatprep.subr.bf16.mxu0 0
        %521 = vmatpush1.bf16.xpose.msra.mxu0 0
        %522 = vmatprep.subr.bf16.mxu0 0
        %523 = vmatpush1.bf16.xpose.msra.mxu0 0
        %524 = vmatprep.subr.bf16.mxu0 0
        %525 = vmatpush1.bf16.xpose.msra.mxu0 0
        %526 = vmatprep.subr.bf16.mxu0 0
        %527 = vmatpush1.bf16.xpose.msra.mxu0 0
        %528 = vmatprep.subr.bf16.mxu0 0
        %529 = vmatpush1.bf16.xpose.msra.mxu0 0
        %530 = vmatprep.subr.bf16.mxu0 0
        %531 = vmatpush1.bf16.xpose.msra.mxu0 0
        %532 = vmatprep.subr.bf16.mxu0 0
        %533 = vmatpush1.bf16.xpose.msra.mxu0 0
        %534 = vmatprep.mubr.bf16.mxu0 0
        %535 = vmatmul.mubr.bf16.gmra.mrb[0].mxu0 %v497
        %v536 = vpop.f32.mrb[0].mxu0
        %v537 = vadd.f32 %v336, %v536
        %v538 = vpop.f32.mrb[0].mxu0
        %v539 = vpop.f32.mrb[0].mxu0
        %v540 = vpop.f32.mrb[0].mxu0
        %541 = vdwg.mxu0
        %vm542 = vcmask 64512
        %v543 = vsel %vm542, %v390, -inf
        %544 = vmax.xlane.f32.xlu0 %v543
        %v545 = vpop.xlane.xlu0 %544
        %v546 = vsel %vm542, %v439, -inf
        %547 = vmax.xlane.f32.xlu0 %v546
        %v548 = vpop.xlane.xlu0 %547
        %v549 = vsel %vm542, %v488, -inf
        %550 = vmax.xlane.f32.xlu0 %v549
        %v551 = vpop.xlane.xlu0 %550
        %v552 = vsel %vm542, %v537, -inf
        %553 = vmax.xlane.f32.xlu0 %v552
        %v554 = vpop.xlane.xlu0 %553
        %v555 = vsub.f32 %v390, %v545
        %v556 = vsub.f32 %v439, %v548
        %v557 = vsub.f32 %v488, %v551
        %v558 = vsub.f32 %v537, %v554
        %v559 = vmul.f32 %v555, 1.442695
        %v560 = vpow.pop %v559
        %v561 = vmul.f32 %v556, 1.442695
        %v562 = vpow.pop %v561
        %v563 = vmul.f32 %v557, 1.442695
        %v564 = vpow.pop %v563
        %v565 = vmul.f32 %v558, 1.442695
        %v566 = vpow.pop %v565
        %v567 = vsel %vm542, %v560, 0.0
        %568 = vadd.xlane.f32.xlu0 %v567
        %v569 = vpop.xlane.xlu0 %568
        %v570 = vsel %vm542, %v562, 0.0
        %571 = vadd.xlane.f32.xlu0 %v570
        %v572 = vpop.xlane.xlu0 %571
        %v573 = vsel %vm542, %v564, 0.0
        %574 = vadd.xlane.f32.xlu0 %v573
        %v575 = vpop.xlane.xlu0 %574
        %v576 = vsel %vm542, %v566, 0.0
        %577 = vadd.xlane.f32.xlu0 %v576
        %v578 = vpop.xlane.xlu0 %577
        %v579 = vrcp.pop %v569
        %v580 = vrcp.pop %v572
        %v581 = vrcp.pop %v575
        %v582 = vrcp.pop %v578
        %v583 = vmul.f32 %v560, %v579
        %v584 = vmul.f32 %v562, %v580
        %v585 = vmul.f32 %v564, %v581
        %v586 = vmul.f32 %v566, %v582
        %v587 = vpack.c.bf16 %v583, %v583
        %v588 = vpack.c.bf16 %v584, %v584
        %v589 = vpack.c.bf16 %v585, %v585
        %v590 = vpack.c.bf16 %v586, %v586
        %v592 = vsel %vm542, %v587, 0
        %vm594 = vcmask 1043456
        %v596 = vsel %vm594, %v341, 0
        %598 = vmatprep.subr.bf16.mxu0 0
        %599 = vmatpush1.bf16.msra.mxu0 %v596
        %600 = vmatprep.subr.bf16.mxu0 0
        %601 = vmatpush1.bf16.msra.mxu0 0
        %602 = vmatprep.subr.bf16.mxu0 0
        %603 = vmatpush1.bf16.msra.mxu0 0
        %604 = vmatprep.subr.bf16.mxu0 0
        %605 = vmatpush1.bf16.msra.mxu0 0
        %606 = vmatprep.subr.bf16.mxu0 0
        %607 = vmatpush1.bf16.msra.mxu0 0
        %608 = vmatprep.subr.bf16.mxu0 0
        %609 = vmatpush1.bf16.msra.mxu0 0
        %610 = vmatprep.subr.bf16.mxu0 0
        %611 = vmatpush1.bf16.msra.mxu0 0
        %612 = vmatprep.subr.bf16.mxu0 0
        %613 = vmatpush1.bf16.msra.mxu0 0
        %614 = vmatprep.subr.bf16.mxu0 0
        %615 = vmatpush1.bf16.msra.mxu0 0
        %616 = vmatprep.subr.bf16.mxu0 0
        %617 = vmatpush1.bf16.msra.mxu0 0
        %618 = vmatprep.subr.bf16.mxu0 0
        %619 = vmatpush1.bf16.msra.mxu0 0
        %620 = vmatprep.subr.bf16.mxu0 0
        %621 = vmatpush1.bf16.msra.mxu0 0
        %622 = vmatprep.subr.bf16.mxu0 0
        %623 = vmatpush1.bf16.msra.mxu0 0
        %624 = vmatprep.subr.bf16.mxu0 0
        %625 = vmatpush1.bf16.msra.mxu0 0
        %626 = vmatprep.subr.bf16.mxu0 0
        %627 = vmatpush1.bf16.msra.mxu0 0
        %628 = vmatprep.subr.bf16.mxu0 0
        %629 = vmatpush1.bf16.msra.mxu0 0
        %630 = vmatprep.mubr.bf16.mxu0 0
        %631 = vmatmul.mubr.bf16.gmra.mrb[0].mxu0 %v592
        %v632 = vpop.f32.mrb[0].mxu0
        %v633 = vadd.f32 0.0, %v632
        %v634 = vpop.f32.mrb[0].mxu0
        %v635 = vpop.f32.mrb[0].mxu0
        %v636 = vpop.f32.mrb[0].mxu0
        %637 = vdwg.mxu0
        %v639 = vsel %vm542, %v588, 0
        %v642 = vsel %vm594, %v342, 0
        %644 = vmatprep.subr.bf16.mxu0 0
        %645 = vmatpush1.bf16.msra.mxu0 %v642
        %646 = vmatprep.subr.bf16.mxu0 0
        %647 = vmatpush1.bf16.msra.mxu0 0
        %648 = vmatprep.subr.bf16.mxu0 0
        %649 = vmatpush1.bf16.msra.mxu0 0
        %650 = vmatprep.subr.bf16.mxu0 0
        %651 = vmatpush1.bf16.msra.mxu0 0
        %652 = vmatprep.subr.bf16.mxu0 0
        %653 = vmatpush1.bf16.msra.mxu0 0
        %654 = vmatprep.subr.bf16.mxu0 0
        %655 = vmatpush1.bf16.msra.mxu0 0
        %656 = vmatprep.subr.bf16.mxu0 0
        %657 = vmatpush1.bf16.msra.mxu0 0
        %658 = vmatprep.subr.bf16.mxu0 0
        %659 = vmatpush1.bf16.msra.mxu0 0
        %660 = vmatprep.subr.bf16.mxu0 0
        %661 = vmatpush1.bf16.msra.mxu0 0
        %662 = vmatprep.subr.bf16.mxu0 0
        %663 = vmatpush1.bf16.msra.mxu0 0
        %664 = vmatprep.subr.bf16.mxu0 0
        %665 = vmatpush1.bf16.msra.mxu0 0
        %666 = vmatprep.subr.bf16.mxu0 0
        %667 = vmatpush1.bf16.msra.mxu0 0
        %668 = vmatprep.subr.bf16.mxu0 0
        %669 = vmatpush1.bf16.msra.mxu0 0
        %670 = vmatprep.subr.bf16.mxu0 0
        %671 = vmatpush1.bf16.msra.mxu0 0
        %672 = vmatprep.subr.bf16.mxu0 0
        %673 = vmatpush1.bf16.msra.mxu0 0
        %674 = vmatprep.subr.bf16.mxu0 0
        %675 = vmatpush1.bf16.msra.mxu0 0
        %676 = vmatprep.mubr.bf16.mxu0 0
        %677 = vmatmul.mubr.bf16.gmra.mrb[0].mxu0 %v639
        %v678 = vpop.f32.mrb[0].mxu0
        %v679 = vadd.f32 0.0, %v678
        %v680 = vpop.f32.mrb[0].mxu0
        %v681 = vpop.f32.mrb[0].mxu0
        %v682 = vpop.f32.mrb[0].mxu0
        %683 = vdwg.mxu0
        %v685 = vsel %vm542, %v589, 0
        %v688 = vsel %vm594, %v343, 0
        %690 = vmatprep.subr.bf16.mxu0 0
        %691 = vmatpush1.bf16.msra.mxu0 %v688
        %692 = vmatprep.subr.bf16.mxu0 0
        %693 = vmatpush1.bf16.msra.mxu0 0
        %694 = vmatprep.subr.bf16.mxu0 0
        %695 = vmatpush1.bf16.msra.mxu0 0
        %696 = vmatprep.subr.bf16.mxu0 0
        %697 = vmatpush1.bf16.msra.mxu0 0
        %698 = vmatprep.subr.bf16.mxu0 0
        %699 = vmatpush1.bf16.msra.mxu0 0
        %700 = vmatprep.subr.bf16.mxu0 0
        %701 = vmatpush1.bf16.msra.mxu0 0
        %702 = vmatprep.subr.bf16.mxu0 0
        %703 = vmatpush1.bf16.msra.mxu0 0
        %704 = vmatprep.subr.bf16.mxu0 0
        %705 = vmatpush1.bf16.msra.mxu0 0
        %706 = vmatprep.subr.bf16.mxu0 0
        %707 = vmatpush1.bf16.msra.mxu0 0
        %708 = vmatprep.subr.bf16.mxu0 0
        %709 = vmatpush1.bf16.msra.mxu0 0
        %710 = vmatprep.subr.bf16.mxu0 0
        %711 = vmatpush1.bf16.msra.mxu0 0
        %712 = vmatprep.subr.bf16.mxu0 0
        %713 = vmatpush1.bf16.msra.mxu0 0
        %714 = vmatprep.subr.bf16.mxu0 0
        %715 = vmatpush1.bf16.msra.mxu0 0
        %716 = vmatprep.subr.bf16.mxu0 0
        %717 = vmatpush1.bf16.msra.mxu0 0
        %718 = vmatprep.subr.bf16.mxu0 0
        %719 = vmatpush1.bf16.msra.mxu0 0
        %720 = vmatprep.subr.bf16.mxu0 0
        %721 = vmatpush1.bf16.msra.mxu0 0
        %722 = vmatprep.mubr.bf16.mxu0 0
        %723 = vmatmul.mubr.bf16.gmra.mrb[0].mxu0 %v685
        %v724 = vpop.f32.mrb[0].mxu0
        %v725 = vadd.f32 0.0, %v724
        %v726 = vpop.f32.mrb[0].mxu0
        %v727 = vpop.f32.mrb[0].mxu0
        %v728 = vpop.f32.mrb[0].mxu0
        %729 = vdwg.mxu0
        %v731 = vsel %vm542, %v590, 0
        %v734 = vsel %vm594, %v344, 0
        %736 = vmatprep.subr.bf16.mxu0 0
        %737 = vmatpush1.bf16.msra.mxu0 %v734
        %738 = vmatprep.subr.bf16.mxu0 0
        %739 = vmatpush1.bf16.msra.mxu0 0
        %740 = vmatprep.subr.bf16.mxu0 0
        %741 = vmatpush1.bf16.msra.mxu0 0
        %742 = vmatprep.subr.bf16.mxu0 0
        %743 = vmatpush1.bf16.msra.mxu0 0
        %744 = vmatprep.subr.bf16.mxu0 0
        %745 = vmatpush1.bf16.msra.mxu0 0
        %746 = vmatprep.subr.bf16.mxu0 0
        %747 = vmatpush1.bf16.msra.mxu0 0
        %748 = vmatprep.subr.bf16.mxu0 0
        %749 = vmatpush1.bf16.msra.mxu0 0
        %750 = vmatprep.subr.bf16.mxu0 0
        %751 = vmatpush1.bf16.msra.mxu0 0
        %752 = vmatprep.subr.bf16.mxu0 0
        %753 = vmatpush1.bf16.msra.mxu0 0
        %754 = vmatprep.subr.bf16.mxu0 0
        %755 = vmatpush1.bf16.msra.mxu0 0
        %756 = vmatprep.subr.bf16.mxu0 0
        %757 = vmatpush1.bf16.msra.mxu0 0
        %758 = vmatprep.subr.bf16.mxu0 0
        %759 = vmatpush1.bf16.msra.mxu0 0
        %760 = vmatprep.subr.bf16.mxu0 0
        %761 = vmatpush1.bf16.msra.mxu0 0
        %762 = vmatprep.subr.bf16.mxu0 0
        %763 = vmatpush1.bf16.msra.mxu0 0
        %764 = vmatprep.subr.bf16.mxu0 0
        %765 = vmatpush1.bf16.msra.mxu0 0
        %766 = vmatprep.subr.bf16.mxu0 0
        %767 = vmatpush1.bf16.msra.mxu0 0
        %768 = vmatprep.mubr.bf16.mxu0 0
        %769 = vmatmul.mubr.bf16.gmra.mrb[0].mxu0 %v731
        %v770 = vpop.f32.mrb[0].mxu0
        %v771 = vadd.f32 0.0, %v770
        %v772 = vpop.f32.mrb[0].mxu0
        %v773 = vpop.f32.mrb[0].mxu0
        %v774 = vpop.f32.mrb[0].mxu0
        %775 = vdwg.mxu0
        %v776 = vpack.c.bf16 %v679, %v633
        %v777 = vpack.c.bf16 %v771, %v725
        %v778 = vld [vmem:[%s3] sm:$0xf]
        %v779 = vld [vmem:[%s3 + $0x4] sm:$0xf]
        %780 = vrot.lane.b32.xlu0 %v337, 112
        %v781 = vpop.permute.xlu0 %780
        %782 = vrot.lane.b32.xlu0 %v337, 48
        %v783 = vpop.permute.xlu0 %782
        %v785 = vsel %vm348, %v781, 0
        %v788 = vsel %vm348, %v783, 0
        %790 = vmatprep.subr.bf16.mxu0 0
        %791 = vmatpush1.bf16.xpose.msra.mxu0 %v788
        %792 = vmatprep.subr.bf16.mxu0 0
        %793 = vmatpush1.bf16.xpose.msra.mxu0 0
        %794 = vmatprep.subr.bf16.mxu0 0
        %795 = vmatpush1.bf16.xpose.msra.mxu0 0
        %796 = vmatprep.subr.bf16.mxu0 0
        %797 = vmatpush1.bf16.xpose.msra.mxu0 0
        %798 = vmatprep.subr.bf16.mxu0 0
        %799 = vmatpush1.bf16.xpose.msra.mxu0 0
        %800 = vmatprep.subr.bf16.mxu0 0
        %801 = vmatpush1.bf16.xpose.msra.mxu0 0
        %802 = vmatprep.subr.bf16.mxu0 0
        %803 = vmatpush1.bf16.xpose.msra.mxu0 0
        %804 = vmatprep.subr.bf16.mxu0 0
        %805 = vmatpush1.bf16.xpose.msra.mxu0 0
        %806 = vmatprep.subr.bf16.mxu0 0
        %807 = vmatpush1.bf16.xpose.msra.mxu0 0
        %808 = vmatprep.subr.bf16.mxu0 0
        %809 = vmatpush1.bf16.xpose.msra.mxu0 0
        %810 = vmatprep.subr.bf16.mxu0 0
        %811 = vmatpush1.bf16.xpose.msra.mxu0 0
        %812 = vmatprep.subr.bf16.mxu0 0
        %813 = vmatpush1.bf16.xpose.msra.mxu0 0
        %814 = vmatprep.subr.bf16.mxu0 0
        %815 = vmatpush1.bf16.xpose.msra.mxu0 0
        %816 = vmatprep.subr.bf16.mxu0 0
        %817 = vmatpush1.bf16.xpose.msra.mxu0 0
        %818 = vmatprep.subr.bf16.mxu0 0
        %819 = vmatpush1.bf16.xpose.msra.mxu0 0
        %820 = vmatprep.subr.bf16.mxu0 0
        %821 = vmatpush1.bf16.xpose.msra.mxu0 0
        %822 = vmatprep.mubr.bf16.mxu0 0
        %823 = vmatmul.mubr.bf16.gmra.mrb[0].mxu0 %v785
        %v824 = vpop.f32.mrb[0].mxu0
        %v825 = vadd.f32 %v336, %v824
        %v826 = vpop.f32.mrb[0].mxu0
        %v827 = vpop.f32.mrb[0].mxu0
        %v828 = vpop.f32.mrb[0].mxu0
        %829 = vdwg.mxu0
        %830 = vrot.lane.b32.xlu0 %v338, 112
        %v831 = vpop.permute.xlu0 %830
        %832 = vrot.lane.b32.xlu0 %v338, 48
        %v833 = vpop.permute.xlu0 %832
        %v835 = vsel %vm348, %v831, 0
        %v838 = vsel %vm348, %v833, 0
        %840 = vmatprep.subr.bf16.mxu0 0
        %841 = vmatpush1.bf16.xpose.msra.mxu0 %v838
        %842 = vmatprep.subr.bf16.mxu0 0
        %843 = vmatpush1.bf16.xpose.msra.mxu0 0
        %844 = vmatprep.subr.bf16.mxu0 0
        %845 = vmatpush1.bf16.xpose.msra.mxu0 0
        %846 = vmatprep.subr.bf16.mxu0 0
        %847 = vmatpush1.bf16.xpose.msra.mxu0 0
        %848 = vmatprep.subr.bf16.mxu0 0
        %849 = vmatpush1.bf16.xpose.msra.mxu0 0
        %850 = vmatprep.subr.bf16.mxu0 0
        %851 = vmatpush1.bf16.xpose.msra.mxu0 0
        %852 = vmatprep.subr.bf16.mxu0 0
        %853 = vmatpush1.bf16.xpose.msra.mxu0 0
        %854 = vmatprep.subr.bf16.mxu0 0
        %855 = vmatpush1.bf16.xpose.msra.mxu0 0
        %856 = vmatprep.subr.bf16.mxu0 0
        %857 = vmatpush1.bf16.xpose.msra.mxu0 0
        %858 = vmatprep.subr.bf16.mxu0 0
        %859 = vmatpush1.bf16.xpose.msra.mxu0 0
        %860 = vmatprep.subr.bf16.mxu0 0
        %861 = vmatpush1.bf16.xpose.msra.mxu0 0
        %862 = vmatprep.subr.bf16.mxu0 0
        %863 = vmatpush1.bf16.xpose.msra.mxu0 0
        %864 = vmatprep.subr.bf16.mxu0 0
        %865 = vmatpush1.bf16.xpose.msra.mxu0 0
        %866 = vmatprep.subr.bf16.mxu0 0
        %867 = vmatpush1.bf16.xpose.msra.mxu0 0
        %868 = vmatprep.subr.bf16.mxu0 0
        %869 = vmatpush1.bf16.xpose.msra.mxu0 0
        %870 = vmatprep.subr.bf16.mxu0 0
        %871 = vmatpush1.bf16.xpose.msra.mxu0 0
        %872 = vmatprep.mubr.bf16.mxu0 0
        %873 = vmatmul.mubr.bf16.gmra.mrb[0].mxu0 %v835
        %v874 = vpop.f32.mrb[0].mxu0
        %v875 = vadd.f32 %v336, %v874
        %v876 = vpop.f32.mrb[0].mxu0
        %v877 = vpop.f32.mrb[0].mxu0
        %v878 = vpop.f32.mrb[0].mxu0
        %879 = vdwg.mxu0
        %880 = vrot.lane.b32.xlu0 %v339, 112
        %v881 = vpop.permute.xlu0 %880
        %882 = vrot.lane.b32.xlu0 %v339, 48
        %v883 = vpop.permute.xlu0 %882
        %v885 = vsel %vm348, %v881, 0
        %v888 = vsel %vm348, %v883, 0
        %890 = vmatprep.subr.bf16.mxu0 0
        %891 = vmatpush1.bf16.xpose.msra.mxu0 %v888
        %892 = vmatprep.subr.bf16.mxu0 0
        %893 = vmatpush1.bf16.xpose.msra.mxu0 0
        %894 = vmatprep.subr.bf16.mxu0 0
        %895 = vmatpush1.bf16.xpose.msra.mxu0 0
        %896 = vmatprep.subr.bf16.mxu0 0
        %897 = vmatpush1.bf16.xpose.msra.mxu0 0
        %898 = vmatprep.subr.bf16.mxu0 0
        %899 = vmatpush1.bf16.xpose.msra.mxu0 0
        %900 = vmatprep.subr.bf16.mxu0 0
        %901 = vmatpush1.bf16.xpose.msra.mxu0 0
        %902 = vmatprep.subr.bf16.mxu0 0
        %903 = vmatpush1.bf16.xpose.msra.mxu0 0
        %904 = vmatprep.subr.bf16.mxu0 0
        %905 = vmatpush1.bf16.xpose.msra.mxu0 0
        %906 = vmatprep.subr.bf16.mxu0 0
        %907 = vmatpush1.bf16.xpose.msra.mxu0 0
        %908 = vmatprep.subr.bf16.mxu0 0
        %909 = vmatpush1.bf16.xpose.msra.mxu0 0
        %910 = vmatprep.subr.bf16.mxu0 0
        %911 = vmatpush1.bf16.xpose.msra.mxu0 0
        %912 = vmatprep.subr.bf16.mxu0 0
        %913 = vmatpush1.bf16.xpose.msra.mxu0 0
        %914 = vmatprep.subr.bf16.mxu0 0
        %915 = vmatpush1.bf16.xpose.msra.mxu0 0
        %916 = vmatprep.subr.bf16.mxu0 0
        %917 = vmatpush1.bf16.xpose.msra.mxu0 0
        %918 = vmatprep.subr.bf16.mxu0 0
        %919 = vmatpush1.bf16.xpose.msra.mxu0 0
        %920 = vmatprep.subr.bf16.mxu0 0
        %921 = vmatpush1.bf16.xpose.msra.mxu0 0
        %922 = vmatprep.mubr.bf16.mxu0 0
        %923 = vmatmul.mubr.bf16.gmra.mrb[0].mxu0 %v885
        %v924 = vpop.f32.mrb[0].mxu0
        %v925 = vadd.f32 %v336, %v924
        %v926 = vpop.f32.mrb[0].mxu0
        %v927 = vpop.f32.mrb[0].mxu0
        %v928 = vpop.f32.mrb[0].mxu0
        %929 = vdwg.mxu0
        %930 = vrot.lane.b32.xlu0 %v340, 112
        %v931 = vpop.permute.xlu0 %930
        %932 = vrot.lane.b32.xlu0 %v340, 48
        %v933 = vpop.permute.xlu0 %932
        %v935 = vsel %vm348, %v931, 0
        %v938 = vsel %vm348, %v933, 0
        %940 = vmatprep.subr.bf16.mxu0 0
        %941 = vmatpush1.bf16.xpose.msra.mxu0 %v938
        %942 = vmatprep.subr.bf16.mxu0 0
        %943 = vmatpush1.bf16.xpose.msra.mxu0 0
        %944 = vmatprep.subr.bf16.mxu0 0
        %945 = vmatpush1.bf16.xpose.msra.mxu0 0
        %946 = vmatprep.subr.bf16.mxu0 0
        %947 = vmatpush1.bf16.xpose.msra.mxu0 0
        %948 = vmatprep.subr.bf16.mxu0 0
        %949 = vmatpush1.bf16.xpose.msra.mxu0 0
        %950 = vmatprep.subr.bf16.mxu0 0
        %951 = vmatpush1.bf16.xpose.msra.mxu0 0
        %952 = vmatprep.subr.bf16.mxu0 0
        %953 = vmatpush1.bf16.xpose.msra.mxu0 0
        %954 = vmatprep.subr.bf16.mxu0 0
        %955 = vmatpush1.bf16.xpose.msra.mxu0 0
        %956 = vmatprep.subr.bf16.mxu0 0
        %957 = vmatpush1.bf16.xpose.msra.mxu0 0
        %958 = vmatprep.subr.bf16.mxu0 0
        %959 = vmatpush1.bf16.xpose.msra.mxu0 0
        %960 = vmatprep.subr.bf16.mxu0 0
        %961 = vmatpush1.bf16.xpose.msra.mxu0 0
        %962 = vmatprep.subr.bf16.mxu0 0
        %963 = vmatpush1.bf16.xpose.msra.mxu0 0
        %964 = vmatprep.subr.bf16.mxu0 0
        %965 = vmatpush1.bf16.xpose.msra.mxu0 0
        %966 = vmatprep.subr.bf16.mxu0 0
        %967 = vmatpush1.bf16.xpose.msra.mxu0 0
        %968 = vmatprep.subr.bf16.mxu0 0
        %969 = vmatpush1.bf16.xpose.msra.mxu0 0
        %970 = vmatprep.subr.bf16.mxu0 0
        %971 = vmatpush1.bf16.xpose.msra.mxu0 0
        %972 = vmatprep.mubr.bf16.mxu0 0
        %973 = vmatmul.mubr.bf16.gmra.mrb[0].mxu0 %v935
        %v974 = vpop.f32.mrb[0].mxu0
        %v975 = vadd.f32 %v336, %v974
        %v976 = vpop.f32.mrb[0].mxu0
        %v977 = vpop.f32.mrb[0].mxu0
        %v978 = vpop.f32.mrb[0].mxu0
        %979 = vdwg.mxu0
        %v980 = vsel %vm542, %v825, -inf
        %981 = vmax.xlane.f32.xlu0 %v980
        %v982 = vpop.xlane.xlu0 %981
        %v983 = vsel %vm542, %v875, -inf
        %984 = vmax.xlane.f32.xlu0 %v983
        %v985 = vpop.xlane.xlu0 %984
        %v986 = vsel %vm542, %v925, -inf
        %987 = vmax.xlane.f32.xlu0 %v986
        %v988 = vpop.xlane.xlu0 %987
        %v989 = vsel %vm542, %v975, -inf
        %990 = vmax.xlane.f32.xlu0 %v989
        %v991 = vpop.xlane.xlu0 %990
        %v992 = vsub.f32 %v825, %v982
        %v993 = vsub.f32 %v875, %v985
        %v994 = vsub.f32 %v925, %v988
        %v995 = vsub.f32 %v975, %v991
        %v996 = vmul.f32 %v992, 1.442695
        %v997 = vpow.pop %v996
        %v998 = vmul.f32 %v993, 1.442695
        %v999 = vpow.pop %v998
        %v1000 = vmul.f32 %v994, 1.442695
        %v1001 = vpow.pop %v1000
        %v1002 = vmul.f32 %v995, 1.442695
        %v1003 = vpow.pop %v1002
        %v1004 = vsel %vm542, %v997, 0.0
        %1005 = vadd.xlane.f32.xlu0 %v1004
        %v1006 = vpop.xlane.xlu0 %1005
        %v1007 = vsel %vm542, %v999, 0.0
        %1008 = vadd.xlane.f32.xlu0 %v1007
        %v1009 = vpop.xlane.xlu0 %1008
        %v1010 = vsel %vm542, %v1001, 0.0
        %1011 = vadd.xlane.f32.xlu0 %v1010
        %v1012 = vpop.xlane.xlu0 %1011
        %v1013 = vsel %vm542, %v1003, 0.0
        %1014 = vadd.xlane.f32.xlu0 %v1013
        %v1015 = vpop.xlane.xlu0 %1014
        %v1016 = vrcp.pop %v1006
        %v1017 = vrcp.pop %v1009
        %v1018 = vrcp.pop %v1012
        %v1019 = vrcp.pop %v1015
        %v1020 = vmul.f32 %v997, %v1016
        %v1021 = vmul.f32 %v999, %v1017
        %v1022 = vmul.f32 %v1001, %v1018
        %v1023 = vmul.f32 %v1003, %v1019
        %v1024 = vpack.c.bf16 %v1020, %v1020
        %v1025 = vpack.c.bf16 %v1021, %v1021
        %v1026 = vpack.c.bf16 %v1022, %v1022
        %v1027 = vpack.c.bf16 %v1023, %v1023
        %1029 = vrot.lane.b32.xlu0 %v341, 112
        %v1030 = vpop.permute.xlu0 %1029
        %v1032 = vsel %vm542, %v1024, 0
        %v1035 = vsel %vm594, %v1030, 0
        %1037 = vmatprep.subr.bf16.mxu0 0
        %1038 = vmatpush1.bf16.msra.mxu0 %v1035
        %1039 = vmatprep.subr.bf16.mxu0 0
        %1040 = vmatpush1.bf16.msra.mxu0 0
        %1041 = vmatprep.subr.bf16.mxu0 0
        %1042 = vmatpush1.bf16.msra.mxu0 0
        %1043 = vmatprep.subr.bf16.mxu0 0
        %1044 = vmatpush1.bf16.msra.mxu0 0
        %1045 = vmatprep.subr.bf16.mxu0 0
        %1046 = vmatpush1.bf16.msra.mxu0 0
        %1047 = vmatprep.subr.bf16.mxu0 0
        %1048 = vmatpush1.bf16.msra.mxu0 0
        %1049 = vmatprep.subr.bf16.mxu0 0
        %1050 = vmatpush1.bf16.msra.mxu0 0
        %1051 = vmatprep.subr.bf16.mxu0 0
        %1052 = vmatpush1.bf16.msra.mxu0 0
        %1053 = vmatprep.subr.bf16.mxu0 0
        %1054 = vmatpush1.bf16.msra.mxu0 0
        %1055 = vmatprep.subr.bf16.mxu0 0
        %1056 = vmatpush1.bf16.msra.mxu0 0
        %1057 = vmatprep.subr.bf16.mxu0 0
        %1058 = vmatpush1.bf16.msra.mxu0 0
        %1059 = vmatprep.subr.bf16.mxu0 0
        %1060 = vmatpush1.bf16.msra.mxu0 0
        %1061 = vmatprep.subr.bf16.mxu0 0
        %1062 = vmatpush1.bf16.msra.mxu0 0
        %1063 = vmatprep.subr.bf16.mxu0 0
        %1064 = vmatpush1.bf16.msra.mxu0 0
        %1065 = vmatprep.subr.bf16.mxu0 0
        %1066 = vmatpush1.bf16.msra.mxu0 0
        %1067 = vmatprep.subr.bf16.mxu0 0
        %1068 = vmatpush1.bf16.msra.mxu0 0
        %1069 = vmatprep.mubr.bf16.mxu0 0
        %1070 = vmatmul.mubr.bf16.gmra.mrb[0].mxu0 %v1032
        %v1071 = vpop.f32.mrb[0].mxu0
        %v1072 = vadd.f32 0.0, %v1071
        %v1073 = vpop.f32.mrb[0].mxu0
        %v1074 = vpop.f32.mrb[0].mxu0
        %v1075 = vpop.f32.mrb[0].mxu0
        %1076 = vdwg.mxu0
        %1078 = vrot.lane.b32.xlu0 %v342, 112
        %v1079 = vpop.permute.xlu0 %1078
        %v1081 = vsel %vm542, %v1025, 0
        %v1084 = vsel %vm594, %v1079, 0
        %1086 = vmatprep.subr.bf16.mxu0 0
        %1087 = vmatpush1.bf16.msra.mxu0 %v1084
        %1088 = vmatprep.subr.bf16.mxu0 0
        %1089 = vmatpush1.bf16.msra.mxu0 0
        %1090 = vmatprep.subr.bf16.mxu0 0
        %1091 = vmatpush1.bf16.msra.mxu0 0
        %1092 = vmatprep.subr.bf16.mxu0 0
        %1093 = vmatpush1.bf16.msra.mxu0 0
        %1094 = vmatprep.subr.bf16.mxu0 0
        %1095 = vmatpush1.bf16.msra.mxu0 0
        %1096 = vmatprep.subr.bf16.mxu0 0
        %1097 = vmatpush1.bf16.msra.mxu0 0
        %1098 = vmatprep.subr.bf16.mxu0 0
        %1099 = vmatpush1.bf16.msra.mxu0 0
        %1100 = vmatprep.subr.bf16.mxu0 0
        %1101 = vmatpush1.bf16.msra.mxu0 0
        %1102 = vmatprep.subr.bf16.mxu0 0
        %1103 = vmatpush1.bf16.msra.mxu0 0
        %1104 = vmatprep.subr.bf16.mxu0 0
        %1105 = vmatpush1.bf16.msra.mxu0 0
        %1106 = vmatprep.subr.bf16.mxu0 0
        %1107 = vmatpush1.bf16.msra.mxu0 0
        %1108 = vmatprep.subr.bf16.mxu0 0
        %1109 = vmatpush1.bf16.msra.mxu0 0
        %1110 = vmatprep.subr.bf16.mxu0 0
        %1111 = vmatpush1.bf16.msra.mxu0 0
        %1112 = vmatprep.subr.bf16.mxu0 0
        %1113 = vmatpush1.bf16.msra.mxu0 0
        %1114 = vmatprep.subr.bf16.mxu0 0
        %1115 = vmatpush1.bf16.msra.mxu0 0
        %1116 = vmatprep.subr.bf16.mxu0 0
        %1117 = vmatpush1.bf16.msra.mxu0 0
        %1118 = vmatprep.mubr.bf16.mxu0 0
        %1119 = vmatmul.mubr.bf16.gmra.mrb[0].mxu0 %v1081
        %v1120 = vpop.f32.mrb[0].mxu0
        %v1121 = vadd.f32 0.0, %v1120
        %v1122 = vpop.f32.mrb[0].mxu0
        %v1123 = vpop.f32.mrb[0].mxu0
        %v1124 = vpop.f32.mrb[0].mxu0
        %1125 = vdwg.mxu0
        %1127 = vrot.lane.b32.xlu0 %v343, 112
        %v1128 = vpop.permute.xlu0 %1127
        %v1130 = vsel %vm542, %v1026, 0
        %v1133 = vsel %vm594, %v1128, 0
        %1135 = vmatprep.subr.bf16.mxu0 0
        %1136 = vmatpush1.bf16.msra.mxu0 %v1133
        %1137 = vmatprep.subr.bf16.mxu0 0
        %1138 = vmatpush1.bf16.msra.mxu0 0
        %1139 = vmatprep.subr.bf16.mxu0 0
        %1140 = vmatpush1.bf16.msra.mxu0 0
        %1141 = vmatprep.subr.bf16.mxu0 0
        %1142 = vmatpush1.bf16.msra.mxu0 0
        %1143 = vmatprep.subr.bf16.mxu0 0
        %1144 = vmatpush1.bf16.msra.mxu0 0
        %1145 = vmatprep.subr.bf16.mxu0 0
        %1146 = vmatpush1.bf16.msra.mxu0 0
        %1147 = vmatprep.subr.bf16.mxu0 0
        %1148 = vmatpush1.bf16.msra.mxu0 0
        %1149 = vmatprep.subr.bf16.mxu0 0
        %1150 = vmatpush1.bf16.msra.mxu0 0
        %1151 = vmatprep.subr.bf16.mxu0 0
        %1152 = vmatpush1.bf16.msra.mxu0 0
        %1153 = vmatprep.subr.bf16.mxu0 0
        %1154 = vmatpush1.bf16.msra.mxu0 0
        %1155 = vmatprep.subr.bf16.mxu0 0
        %1156 = vmatpush1.bf16.msra.mxu0 0
        %1157 = vmatprep.subr.bf16.mxu0 0
        %1158 = vmatpush1.bf16.msra.mxu0 0
        %1159 = vmatprep.subr.bf16.mxu0 0
        %1160 = vmatpush1.bf16.msra.mxu0 0
        %1161 = vmatprep.subr.bf16.mxu0 0
        %1162 = vmatpush1.bf16.msra.mxu0 0
        %1163 = vmatprep.subr.bf16.mxu0 0
        %1164 = vmatpush1.bf16.msra.mxu0 0
        %1165 = vmatprep.subr.bf16.mxu0 0
        %1166 = vmatpush1.bf16.msra.mxu0 0
        %1167 = vmatprep.mubr.bf16.mxu0 0
        %1168 = vmatmul.mubr.bf16.gmra.mrb[0].mxu0 %v1130
        %v1169 = vpop.f32.mrb[0].mxu0
        %v1170 = vadd.f32 0.0, %v1169
        %v1171 = vpop.f32.mrb[0].mxu0
        %v1172 = vpop.f32.mrb[0].mxu0
        %v1173 = vpop.f32.mrb[0].mxu0
        %1174 = vdwg.mxu0
        %1176 = vrot.lane.b32.xlu0 %v344, 112
        %v1177 = vpop.permute.xlu0 %1176
        %v1179 = vsel %vm542, %v1027, 0
        %v1182 = vsel %vm594, %v1177, 0
        %1184 = vmatprep.subr.bf16.mxu0 0
        %1185 = vmatpush1.bf16.msra.mxu0 %v1182
        %1186 = vmatprep.subr.bf16.mxu0 0
        %1187 = vmatpush1.bf16.msra.mxu0 0
        %1188 = vmatprep.subr.bf16.mxu0 0
        %1189 = vmatpush1.bf16.msra.mxu0 0
        %1190 = vmatprep.subr.bf16.mxu0 0
        %1191 = vmatpush1.bf16.msra.mxu0 0
        %1192 = vmatprep.subr.bf16.mxu0 0
        %1193 = vmatpush1.bf16.msra.mxu0 0
        %1194 = vmatprep.subr.bf16.mxu0 0
        %1195 = vmatpush1.bf16.msra.mxu0 0
        %1196 = vmatprep.subr.bf16.mxu0 0
        %1197 = vmatpush1.bf16.msra.mxu0 0
        %1198 = vmatprep.subr.bf16.mxu0 0
        %1199 = vmatpush1.bf16.msra.mxu0 0
        %1200 = vmatprep.subr.bf16.mxu0 0
        %1201 = vmatpush1.bf16.msra.mxu0 0
        %1202 = vmatprep.subr.bf16.mxu0 0
        %1203 = vmatpush1.bf16.msra.mxu0 0
        %1204 = vmatprep.subr.bf16.mxu0 0
        %1205 = vmatpush1.bf16.msra.mxu0 0
        %1206 = vmatprep.subr.bf16.mxu0 0
        %1207 = vmatpush1.bf16.msra.mxu0 0
        %1208 = vmatprep.subr.bf16.mxu0 0
        %1209 = vmatpush1.bf16.msra.mxu0 0
        %1210 = vmatprep.subr.bf16.mxu0 0
        %1211 = vmatpush1.bf16.msra.mxu0 0
        %1212 = vmatprep.subr.bf16.mxu0 0
        %1213 = vmatpush1.bf16.msra.mxu0 0
        %1214 = vmatprep.subr.bf16.mxu0 0
        %1215 = vmatpush1.bf16.msra.mxu0 0
        %1216 = vmatprep.mubr.bf16.mxu0 0
        %1217 = vmatmul.mubr.bf16.gmra.mrb[0].mxu0 %v1179
        %v1218 = vpop.f32.mrb[0].mxu0
        %v1219 = vadd.f32 0.0, %v1218
        %v1220 = vpop.f32.mrb[0].mxu0
        %v1221 = vpop.f32.mrb[0].mxu0
        %v1222 = vpop.f32.mrb[0].mxu0
        %1223 = vdwg.mxu0
        %v1224 = vpack.c.bf16 %v1121, %v1072
        %v1225 = vpack.c.bf16 %v1219, %v1170
        %v1226 = vld [vmem:[%s3 + $0x8] sm:$0xf]
        %v1227 = vld [vmem:[%s3 + $0xc] sm:$0xf]
        %v1230 = vunpack.c.l.b16 %v1226
        %v1231 = vunpack.c.l.b16 %v1227
        %v1232 = vpack.c.b16 %v1231, %v1230
        %v1235 = vsel %vm348, %v1224, 0
        %v1238 = vsel %vm348, %v1225, 0
        %1240 = vmatprep.subr.bf16.mxu0 0
        %1241 = vmatpush1.bf16.msra.mxu0 %v1232
        %1242 = vmatprep.subr.bf16.mxu0 0
        %1243 = vmatpush1.bf16.msra.mxu0 0
        %1244 = vmatprep.subr.bf16.mxu0 0
        %1245 = vmatpush1.bf16.msra.mxu0 0
        %1246 = vmatprep.subr.bf16.mxu0 0
        %1247 = vmatpush1.bf16.msra.mxu0 0
        %1248 = vmatprep.subr.bf16.mxu0 0
        %1249 = vmatpush1.bf16.msra.mxu0 0
        %1250 = vmatprep.subr.bf16.mxu0 0
        %1251 = vmatpush1.bf16.msra.mxu0 0
        %1252 = vmatprep.subr.bf16.mxu0 0
        %1253 = vmatpush1.bf16.msra.mxu0 0
        %1254 = vmatprep.subr.bf16.mxu0 0
        %1255 = vmatpush1.bf16.msra.mxu0 0
        %1256 = vmatprep.subr.bf16.mxu0 0
        %1257 = vmatpush1.bf16.msra.mxu0 0
        %1258 = vmatprep.subr.bf16.mxu0 0
        %1259 = vmatpush1.bf16.msra.mxu0 0
        %1260 = vmatprep.subr.bf16.mxu0 0
        %1261 = vmatpush1.bf16.msra.mxu0 0
        %1262 = vmatprep.subr.bf16.mxu0 0
        %1263 = vmatpush1.bf16.msra.mxu0 0
        %1264 = vmatprep.subr.bf16.mxu0 0
        %1265 = vmatpush1.bf16.msra.mxu0 0
        %1266 = vmatprep.subr.bf16.mxu0 0
        %1267 = vmatpush1.bf16.msra.mxu0 0
        %1268 = vmatprep.subr.bf16.mxu0 0
        %1269 = vmatpush1.bf16.msra.mxu0 0
        %1270 = vmatprep.subr.bf16.mxu0 0
        %1271 = vmatpush1.bf16.msra.mxu0 0
        %1272 = vmatprep.mubr.bf16.mxu0 0
        %1273 = vmatmul.mubr.bf16.gmra.mrb[0].mxu0 %v1235
        %v1274 = vpop.f32.mrb[0].mxu0
        %v1275 = vadd.f32 0.0, %v1274
        %v1276 = vpop.f32.mrb[0].mxu0
        %v1277 = vpop.f32.mrb[0].mxu0
        %v1278 = vadd.f32 0.0, %v1277
        %v1279 = vpop.f32.mrb[0].mxu0
        %1280 = vmatprep.mubr.bf16.mxu0 0
        %1281 = vmatmul.mubr.bf16.gmra.mrb[0].mxu0 %v1238
        %v1282 = vpop.f32.mrb[0].mxu0
        %v1283 = vadd.f32 0.0, %v1282
        %v1284 = vpop.f32.mrb[0].mxu0
        %v1285 = vpop.f32.mrb[0].mxu0
        %v1286 = vadd.f32 0.0, %v1285
        %v1287 = vpop.f32.mrb[0].mxu0
        %1288 = vdwg.mxu0
        %v1291 = vunpack.c.l.b16 %v778
        %v1292 = vunpack.c.l.b16 %v779
        %v1293 = vpack.c.b16 %v1292, %v1291
        %v1296 = vsel %vm348, %v776, 0
        %v1299 = vsel %vm348, %v777, 0
        %1301 = vmatprep.subr.bf16.mxu0 0
        %1302 = vmatpush1.bf16.msra.mxu0 %v1293
        %1303 = vmatprep.subr.bf16.mxu0 0
        %1304 = vmatpush1.bf16.msra.mxu0 0
        %1305 = vmatprep.subr.bf16.mxu0 0
        %1306 = vmatpush1.bf16.msra.mxu0 0
        %1307 = vmatprep.subr.bf16.mxu0 0
        %1308 = vmatpush1.bf16.msra.mxu0 0
        %1309 = vmatprep.subr.bf16.mxu0 0
        %1310 = vmatpush1.bf16.msra.mxu0 0
        %1311 = vmatprep.subr.bf16.mxu0 0
        %1312 = vmatpush1.bf16.msra.mxu0 0
        %1313 = vmatprep.subr.bf16.mxu0 0
        %1314 = vmatpush1.bf16.msra.mxu0 0
        %1315 = vmatprep.subr.bf16.mxu0 0
        %1316 = vmatpush1.bf16.msra.mxu0 0
        %1317 = vmatprep.subr.bf16.mxu0 0
        %1318 = vmatpush1.bf16.msra.mxu0 0
        %1319 = vmatprep.subr.bf16.mxu0 0
        %1320 = vmatpush1.bf16.msra.mxu0 0
        %1321 = vmatprep.subr.bf16.mxu0 0
        %1322 = vmatpush1.bf16.msra.mxu0 0
        %1323 = vmatprep.subr.bf16.mxu0 0
        %1324 = vmatpush1.bf16.msra.mxu0 0
        %1325 = vmatprep.subr.bf16.mxu0 0
        %1326 = vmatpush1.bf16.msra.mxu0 0
        %1327 = vmatprep.subr.bf16.mxu0 0
        %1328 = vmatpush1.bf16.msra.mxu0 0
        %1329 = vmatprep.subr.bf16.mxu0 0
        %1330 = vmatpush1.bf16.msra.mxu0 0
        %1331 = vmatprep.subr.bf16.mxu0 0
        %1332 = vmatpush1.bf16.msra.mxu0 0
        %1333 = vmatprep.mubr.bf16.mxu0 0
        %1334 = vmatmul.mubr.bf16.gmra.mrb[0].mxu0 %v1296
        %v1335 = vpop.f32.mrb[0].mxu0
        %v1336 = vadd.f32 %v1275, %v1335
        %v1337 = vpop.f32.mrb[0].mxu0
        %v1338 = vpop.f32.mrb[0].mxu0
        %v1339 = vadd.f32 %v1278, %v1338
        %v1340 = vpop.f32.mrb[0].mxu0
        %1341 = vmatprep.mubr.bf16.mxu0 0
        %1342 = vmatmul.mubr.bf16.gmra.mrb[0].mxu0 %v1299
        %v1343 = vpop.f32.mrb[0].mxu0
        %v1344 = vadd.f32 %v1283, %v1343
        %v1345 = vpop.f32.mrb[0].mxu0
        %v1346 = vpop.f32.mrb[0].mxu0
        %v1347 = vadd.f32 %v1286, %v1346
        %v1348 = vpop.f32.mrb[0].mxu0
        %1349 = vdwg.mxu0
        %1350 = vrot.lane.b32.xlu0 %v337, 96
        %v1351 = vpop.permute.xlu0 %1350
        %1352 = vrot.lane.b32.xlu0 %v337, 32
        %v1353 = vpop.permute.xlu0 %1352
        %v1355 = vsel %vm348, %v1351, 0
        %v1358 = vsel %vm348, %v1353, 0
        %1360 = vmatprep.subr.bf16.mxu0 0
        %1361 = vmatpush1.bf16.xpose.msra.mxu0 %v1358
        %1362 = vmatprep.subr.bf16.mxu0 0
        %1363 = vmatpush1.bf16.xpose.msra.mxu0 0
        %1364 = vmatprep.subr.bf16.mxu0 0
        %1365 = vmatpush1.bf16.xpose.msra.mxu0 0
        %1366 = vmatprep.subr.bf16.mxu0 0
        %1367 = vmatpush1.bf16.xpose.msra.mxu0 0
        %1368 = vmatprep.subr.bf16.mxu0 0
        %1369 = vmatpush1.bf16.xpose.msra.mxu0 0
        %1370 = vmatprep.subr.bf16.mxu0 0
        %1371 = vmatpush1.bf16.xpose.msra.mxu0 0
        %1372 = vmatprep.subr.bf16.mxu0 0
        %1373 = vmatpush1.bf16.xpose.msra.mxu0 0
        %1374 = vmatprep.subr.bf16.mxu0 0
        %1375 = vmatpush1.bf16.xpose.msra.mxu0 0
        %1376 = vmatprep.subr.bf16.mxu0 0
        %1377 = vmatpush1.bf16.xpose.msra.mxu0 0
        %1378 = vmatprep.subr.bf16.mxu0 0
        %1379 = vmatpush1.bf16.xpose.msra.mxu0 0
        %1380 = vmatprep.subr.bf16.mxu0 0
        %1381 = vmatpush1.bf16.xpose.msra.mxu0 0
        %1382 = vmatprep.subr.bf16.mxu0 0
        %1383 = vmatpush1.bf16.xpose.msra.mxu0 0
        %1384 = vmatprep.subr.bf16.mxu0 0
        %1385 = vmatpush1.bf16.xpose.msra.mxu0 0
        %1386 = vmatprep.subr.bf16.mxu0 0
        %1387 = vmatpush1.bf16.xpose.msra.mxu0 0
        %1388 = vmatprep.subr.bf16.mxu0 0
        %1389 = vmatpush1.bf16.xpose.msra.mxu0 0
        %1390 = vmatprep.subr.bf16.mxu0 0
        %1391 = vmatpush1.bf16.xpose.msra.mxu0 0
        %1392 = vmatprep.mubr.bf16.mxu0 0
        %1393 = vmatmul.mubr.bf16.gmra.mrb[0].mxu0 %v1355
        %v1394 = vpop.f32.mrb[0].mxu0
        %v1395 = vadd.f32 %v336, %v1394
        %v1396 = vpop.f32.mrb[0].mxu0
        %v1397 = vpop.f32.mrb[0].mxu0
        %v1398 = vpop.f32.mrb[0].mxu0
        %1399 = vdwg.mxu0
        %1400 = vrot.lane.b32.xlu0 %v338, 96
        %v1401 = vpop.permute.xlu0 %1400
        %1402 = vrot.lane.b32.xlu0 %v338, 32
        %v1403 = vpop.permute.xlu0 %1402
        %v1405 = vsel %vm348, %v1401, 0
        %v1408 = vsel %vm348, %v1403, 0
        %1410 = vmatprep.subr.bf16.mxu0 0
        %1411 = vmatpush1.bf16.xpose.msra.mxu0 %v1408
        %1412 = vmatprep.subr.bf16.mxu0 0
        %1413 = vmatpush1.bf16.xpose.msra.mxu0 0
        %1414 = vmatprep.subr.bf16.mxu0 0
        %1415 = vmatpush1.bf16.xpose.msra.mxu0 0
        %1416 = vmatprep.subr.bf16.mxu0 0
        %1417 = vmatpush1.bf16.xpose.msra.mxu0 0
        %1418 = vmatprep.subr.bf16.mxu0 0
        %1419 = vmatpush1.bf16.xpose.msra.mxu0 0
        %1420 = vmatprep.subr.bf16.mxu0 0
        %1421 = vmatpush1.bf16.xpose.msra.mxu0 0
        %1422 = vmatprep.subr.bf16.mxu0 0
        %1423 = vmatpush1.bf16.xpose.msra.mxu0 0
        %1424 = vmatprep.subr.bf16.mxu0 0
        %1425 = vmatpush1.bf16.xpose.msra.mxu0 0
        %1426 = vmatprep.subr.bf16.mxu0 0
        %1427 = vmatpush1.bf16.xpose.msra.mxu0 0
        %1428 = vmatprep.subr.bf16.mxu0 0
        %1429 = vmatpush1.bf16.xpose.msra.mxu0 0
        %1430 = vmatprep.subr.bf16.mxu0 0
        %1431 = vmatpush1.bf16.xpose.msra.mxu0 0
        %1432 = vmatprep.subr.bf16.mxu0 0
        %1433 = vmatpush1.bf16.xpose.msra.mxu0 0
        %1434 = vmatprep.subr.bf16.mxu0 0
        %1435 = vmatpush1.bf16.xpose.msra.mxu0 0
        %1436 = vmatprep.subr.bf16.mxu0 0
        %1437 = vmatpush1.bf16.xpose.msra.mxu0 0
        %1438 = vmatprep.subr.bf16.mxu0 0
        %1439 = vmatpush1.bf16.xpose.msra.mxu0 0
        %1440 = vmatprep.subr.bf16.mxu0 0
        %1441 = vmatpush1.bf16.xpose.msra.mxu0 0
        %1442 = vmatprep.mubr.bf16.mxu0 0
        %1443 = vmatmul.mubr.bf16.gmra.mrb[0].mxu0 %v1405
        %v1444 = vpop.f32.mrb[0].mxu0
        %v1445 = vadd.f32 %v336, %v1444
        %v1446 = vpop.f32.mrb[0].mxu0
        %v1447 = vpop.f32.mrb[0].mxu0
        %v1448 = vpop.f32.mrb[0].mxu0
        %1449 = vdwg.mxu0
        %1450 = vrot.lane.b32.xlu0 %v339, 96
        %v1451 = vpop.permute.xlu0 %1450
        %1452 = vrot.lane.b32.xlu0 %v339, 32
        %v1453 = vpop.permute.xlu0 %1452
        %v1455 = vsel %vm348, %v1451, 0
        %v1458 = vsel %vm348, %v1453, 0
        %1460 = vmatprep.subr.bf16.mxu0 0
        %1461 = vmatpush1.bf16.xpose.msra.mxu0 %v1458
        %1462 = vmatprep.subr.bf16.mxu0 0
        %1463 = vmatpush1.bf16.xpose.msra.mxu0 0
        %1464 = vmatprep.subr.bf16.mxu0 0
        %1465 = vmatpush1.bf16.xpose.msra.mxu0 0
        %1466 = vmatprep.subr.bf16.mxu0 0
        %1467 = vmatpush1.bf16.xpose.msra.mxu0 0
        %1468 = vmatprep.subr.bf16.mxu0 0
        %1469 = vmatpush1.bf16.xpose.msra.mxu0 0
        %1470 = vmatprep.subr.bf16.mxu0 0
        %1471 = vmatpush1.bf16.xpose.msra.mxu0 0
        %1472 = vmatprep.subr.bf16.mxu0 0
        %1473 = vmatpush1.bf16.xpose.msra.mxu0 0
        %1474 = vmatprep.subr.bf16.mxu0 0
        %1475 = vmatpush1.bf16.xpose.msra.mxu0 0
        %1476 = vmatprep.subr.bf16.mxu0 0
        %1477 = vmatpush1.bf16.xpose.msra.mxu0 0
        %1478 = vmatprep.subr.bf16.mxu0 0
        %1479 = vmatpush1.bf16.xpose.msra.mxu0 0
        %1480 = vmatprep.subr.bf16.mxu0 0
        %1481 = vmatpush1.bf16.xpose.msra.mxu0 0
        %1482 = vmatprep.subr.bf16.mxu0 0
        %1483 = vmatpush1.bf16.xpose.msra.mxu0 0
        %1484 = vmatprep.subr.bf16.mxu0 0
        %1485 = vmatpush1.bf16.xpose.msra.mxu0 0
        %1486 = vmatprep.subr.bf16.mxu0 0
        %1487 = vmatpush1.bf16.xpose.msra.mxu0 0
        %1488 = vmatprep.subr.bf16.mxu0 0
        %1489 = vmatpush1.bf16.xpose.msra.mxu0 0
        %1490 = vmatprep.subr.bf16.mxu0 0
        %1491 = vmatpush1.bf16.xpose.msra.mxu0 0
        %1492 = vmatprep.mubr.bf16.mxu0 0
        %1493 = vmatmul.mubr.bf16.gmra.mrb[0].mxu0 %v1455
        %v1494 = vpop.f32.mrb[0].mxu0
        %v1495 = vadd.f32 %v336, %v1494
        %v1496 = vpop.f32.mrb[0].mxu0
        %v1497 = vpop.f32.mrb[0].mxu0
        %v1498 = vpop.f32.mrb[0].mxu0
        %1499 = vdwg.mxu0
        %1500 = vrot.lane.b32.xlu0 %v340, 96
        %v1501 = vpop.permute.xlu0 %1500
        %1502 = vrot.lane.b32.xlu0 %v340, 32
        %v1503 = vpop.permute.xlu0 %1502
        %v1505 = vsel %vm348, %v1501, 0
        %v1508 = vsel %vm348, %v1503, 0
        %1510 = vmatprep.subr.bf16.mxu0 0
        %1511 = vmatpush1.bf16.xpose.msra.mxu0 %v1508
        %1512 = vmatprep.subr.bf16.mxu0 0
        %1513 = vmatpush1.bf16.xpose.msra.mxu0 0
        %1514 = vmatprep.subr.bf16.mxu0 0
        %1515 = vmatpush1.bf16.xpose.msra.mxu0 0
        %1516 = vmatprep.subr.bf16.mxu0 0
        %1517 = vmatpush1.bf16.xpose.msra.mxu0 0
        %1518 = vmatprep.subr.bf16.mxu0 0
        %1519 = vmatpush1.bf16.xpose.msra.mxu0 0
        %1520 = vmatprep.subr.bf16.mxu0 0
        %1521 = vmatpush1.bf16.xpose.msra.mxu0 0
        %1522 = vmatprep.subr.bf16.mxu0 0
        %1523 = vmatpush1.bf16.xpose.msra.mxu0 0
        %1524 = vmatprep.subr.bf16.mxu0 0
        %1525 = vmatpush1.bf16.xpose.msra.mxu0 0
        %1526 = vmatprep.subr.bf16.mxu0 0
        %1527 = vmatpush1.bf16.xpose.msra.mxu0 0
        %1528 = vmatprep.subr.bf16.mxu0 0
        %1529 = vmatpush1.bf16.xpose.msra.mxu0 0
        %1530 = vmatprep.subr.bf16.mxu0 0
        %1531 = vmatpush1.bf16.xpose.msra.mxu0 0
        %1532 = vmatprep.subr.bf16.mxu0 0
        %1533 = vmatpush1.bf16.xpose.msra.mxu0 0
        %1534 = vmatprep.subr.bf16.mxu0 0
        %1535 = vmatpush1.bf16.xpose.msra.mxu0 0
        %1536 = vmatprep.subr.bf16.mxu0 0
        %1537 = vmatpush1.bf16.xpose.msra.mxu0 0
        %1538 = vmatprep.subr.bf16.mxu0 0
        %1539 = vmatpush1.bf16.xpose.msra.mxu0 0
        %1540 = vmatprep.subr.bf16.mxu0 0
        %1541 = vmatpush1.bf16.xpose.msra.mxu0 0
        %1542 = vmatprep.mubr.bf16.mxu0 0
        %1543 = vmatmul.mubr.bf16.gmra.mrb[0].mxu0 %v1505
        %v1544 = vpop.f32.mrb[0].mxu0
        %v1545 = vadd.f32 %v336, %v1544
        %v1546 = vpop.f32.mrb[0].mxu0
        %v1547 = vpop.f32.mrb[0].mxu0
        %v1548 = vpop.f32.mrb[0].mxu0
        %1549 = vdwg.mxu0
        %v1550 = vsel %vm542, %v1395, -inf
        %1551 = vmax.xlane.f32.xlu0 %v1550
        %v1552 = vpop.xlane.xlu0 %1551
        %v1553 = vsel %vm542, %v1445, -inf
        %1554 = vmax.xlane.f32.xlu0 %v1553
        %v1555 = vpop.xlane.xlu0 %1554
        %v1556 = vsel %vm542, %v1495, -inf
        %1557 = vmax.xlane.f32.xlu0 %v1556
        %v1558 = vpop.xlane.xlu0 %1557
        %v1559 = vsel %vm542, %v1545, -inf
        %1560 = vmax.xlane.f32.xlu0 %v1559
        %v1561 = vpop.xlane.xlu0 %1560
        %v1562 = vsub.f32 %v1395, %v1552
        %v1563 = vsub.f32 %v1445, %v1555
        %v1564 = vsub.f32 %v1495, %v1558
        %v1565 = vsub.f32 %v1545, %v1561
        %v1566 = vmul.f32 %v1562, 1.442695
        %v1567 = vpow.pop %v1566
        %v1568 = vmul.f32 %v1563, 1.442695
        %v1569 = vpow.pop %v1568
        %v1570 = vmul.f32 %v1564, 1.442695
        %v1571 = vpow.pop %v1570
        %v1572 = vmul.f32 %v1565, 1.442695
        %v1573 = vpow.pop %v1572
        %v1574 = vsel %vm542, %v1567, 0.0
        %1575 = vadd.xlane.f32.xlu0 %v1574
        %v1576 = vpop.xlane.xlu0 %1575
        %v1577 = vsel %vm542, %v1569, 0.0
        %1578 = vadd.xlane.f32.xlu0 %v1577
        %v1579 = vpop.xlane.xlu0 %1578
        %v1580 = vsel %vm542, %v1571, 0.0
        %1581 = vadd.xlane.f32.xlu0 %v1580
        %v1582 = vpop.xlane.xlu0 %1581
        %v1583 = vsel %vm542, %v1573, 0.0
        %1584 = vadd.xlane.f32.xlu0 %v1583
        %v1585 = vpop.xlane.xlu0 %1584
        %v1586 = vrcp.pop %v1576
        %v1587 = vrcp.pop %v1579
        %v1588 = vrcp.pop %v1582
        %v1589 = vrcp.pop %v1585
        %v1590 = vmul.f32 %v1567, %v1586
        %v1591 = vmul.f32 %v1569, %v1587
        %v1592 = vmul.f32 %v1571, %v1588
        %v1593 = vmul.f32 %v1573, %v1589
        %v1594 = vpack.c.bf16 %v1590, %v1590
        %v1595 = vpack.c.bf16 %v1591, %v1591
        %v1596 = vpack.c.bf16 %v1592, %v1592
        %v1597 = vpack.c.bf16 %v1593, %v1593
        %1598 = vrot.lane.b32.xlu0 %v341, 96
        %v1599 = vpop.permute.xlu0 %1598
        %v1601 = vsel %vm542, %v1594, 0
        %v1604 = vsel %vm594, %v1599, 0
        %1606 = vmatprep.subr.bf16.mxu0 0
        %1607 = vmatpush1.bf16.msra.mxu0 %v1604
        %1608 = vmatprep.subr.bf16.mxu0 0
        %1609 = vmatpush1.bf16.msra.mxu0 0
        %1610 = vmatprep.subr.bf16.mxu0 0
        %1611 = vmatpush1.bf16.msra.mxu0 0
        %1612 = vmatprep.subr.bf16.mxu0 0
        %1613 = vmatpush1.bf16.msra.mxu0 0
        %1614 = vmatprep.subr.bf16.mxu0 0
        %1615 = vmatpush1.bf16.msra.mxu0 0
        %1616 = vmatprep.subr.bf16.mxu0 0
        %1617 = vmatpush1.bf16.msra.mxu0 0
        %1618 = vmatprep.subr.bf16.mxu0 0
        %1619 = vmatpush1.bf16.msra.mxu0 0
        %1620 = vmatprep.subr.bf16.mxu0 0
        %1621 = vmatpush1.bf16.msra.mxu0 0
        %1622 = vmatprep.subr.bf16.mxu0 0
        %1623 = vmatpush1.bf16.msra.mxu0 0
        %1624 = vmatprep.subr.bf16.mxu0 0
        %1625 = vmatpush1.bf16.msra.mxu0 0
        %1626 = vmatprep.subr.bf16.mxu0 0
        %1627 = vmatpush1.bf16.msra.mxu0 0
        %1628 = vmatprep.subr.bf16.mxu0 0
        %1629 = vmatpush1.bf16.msra.mxu0 0
        %1630 = vmatprep.subr.bf16.mxu0 0
        %1631 = vmatpush1.bf16.msra.mxu0 0
        %1632 = vmatprep.subr.bf16.mxu0 0
        %1633 = vmatpush1.bf16.msra.mxu0 0
        %1634 = vmatprep.subr.bf16.mxu0 0
        %1635 = vmatpush1.bf16.msra.mxu0 0
        %1636 = vmatprep.subr.bf16.mxu0 0
        %1637 = vmatpush1.bf16.msra.mxu0 0
        %1638 = vmatprep.mubr.bf16.mxu0 0
        %1639 = vmatmul.mubr.bf16.gmra.mrb[0].mxu0 %v1601
        %v1640 = vpop.f32.mrb[0].mxu0
        %v1641 = vadd.f32 0.0, %v1640
        %v1642 = vpop.f32.mrb[0].mxu0
        %v1643 = vpop.f32.mrb[0].mxu0
        %v1644 = vpop.f32.mrb[0].mxu0
        %1645 = vdwg.mxu0
        %1646 = vrot.lane.b32.xlu0 %v342, 96
        %v1647 = vpop.permute.xlu0 %1646
        %v1649 = vsel %vm542, %v1595, 0
        %v1652 = vsel %vm594, %v1647, 0
        %1654 = vmatprep.subr.bf16.mxu0 0
        %1655 = vmatpush1.bf16.msra.mxu0 %v1652
        %1656 = vmatprep.subr.bf16.mxu0 0
        %1657 = vmatpush1.bf16.msra.mxu0 0
        %1658 = vmatprep.subr.bf16.mxu0 0
        %1659 = vmatpush1.bf16.msra.mxu0 0
        %1660 = vmatprep.subr.bf16.mxu0 0
        %1661 = vmatpush1.bf16.msra.mxu0 0
        %1662 = vmatprep.subr.bf16.mxu0 0
        %1663 = vmatpush1.bf16.msra.mxu0 0
        %1664 = vmatprep.subr.bf16.mxu0 0
        %1665 = vmatpush1.bf16.msra.mxu0 0
        %1666 = vmatprep.subr.bf16.mxu0 0
        %1667 = vmatpush1.bf16.msra.mxu0 0
        %1668 = vmatprep.subr.bf16.mxu0 0
        %1669 = vmatpush1.bf16.msra.mxu0 0
        %1670 = vmatprep.subr.bf16.mxu0 0
        %1671 = vmatpush1.bf16.msra.mxu0 0
        %1672 = vmatprep.subr.bf16.mxu0 0
        %1673 = vmatpush1.bf16.msra.mxu0 0
        %1674 = vmatprep.subr.bf16.mxu0 0
        %1675 = vmatpush1.bf16.msra.mxu0 0
        %1676 = vmatprep.subr.bf16.mxu0 0
        %1677 = vmatpush1.bf16.msra.mxu0 0
        %1678 = vmatprep.subr.bf16.mxu0 0
        %1679 = vmatpush1.bf16.msra.mxu0 0
        %1680 = vmatprep.subr.bf16.mxu0 0
        %1681 = vmatpush1.bf16.msra.mxu0 0
        %1682 = vmatprep.subr.bf16.mxu0 0
        %1683 = vmatpush1.bf16.msra.mxu0 0
        %1684 = vmatprep.subr.bf16.mxu0 0
        %1685 = vmatpush1.bf16.msra.mxu0 0
        %1686 = vmatprep.mubr.bf16.mxu0 0
        %1687 = vmatmul.mubr.bf16.gmra.mrb[0].mxu0 %v1649
        %v1688 = vpop.f32.mrb[0].mxu0
        %v1689 = vadd.f32 0.0, %v1688
        %v1690 = vpop.f32.mrb[0].mxu0
        %v1691 = vpop.f32.mrb[0].mxu0
        %v1692 = vpop.f32.mrb[0].mxu0
        %1693 = vdwg.mxu0
        %1694 = vrot.lane.b32.xlu0 %v343, 96
        %v1695 = vpop.permute.xlu0 %1694
        %v1697 = vsel %vm542, %v1596, 0
        %v1700 = vsel %vm594, %v1695, 0
        %1702 = vmatprep.subr.bf16.mxu0 0
        %1703 = vmatpush1.bf16.msra.mxu0 %v1700
        %1704 = vmatprep.subr.bf16.mxu0 0
        %1705 = vmatpush1.bf16.msra.mxu0 0
        %1706 = vmatprep.subr.bf16.mxu0 0
        %1707 = vmatpush1.bf16.msra.mxu0 0
        %1708 = vmatprep.subr.bf16.mxu0 0
        %1709 = vmatpush1.bf16.msra.mxu0 0
        %1710 = vmatprep.subr.bf16.mxu0 0
        %1711 = vmatpush1.bf16.msra.mxu0 0
        %1712 = vmatprep.subr.bf16.mxu0 0
        %1713 = vmatpush1.bf16.msra.mxu0 0
        %1714 = vmatprep.subr.bf16.mxu0 0
        %1715 = vmatpush1.bf16.msra.mxu0 0
        %1716 = vmatprep.subr.bf16.mxu0 0
        %1717 = vmatpush1.bf16.msra.mxu0 0
        %1718 = vmatprep.subr.bf16.mxu0 0
        %1719 = vmatpush1.bf16.msra.mxu0 0
        %1720 = vmatprep.subr.bf16.mxu0 0
        %1721 = vmatpush1.bf16.msra.mxu0 0
        %1722 = vmatprep.subr.bf16.mxu0 0
        %1723 = vmatpush1.bf16.msra.mxu0 0
        %1724 = vmatprep.subr.bf16.mxu0 0
        %1725 = vmatpush1.bf16.msra.mxu0 0
        %1726 = vmatprep.subr.bf16.mxu0 0
        %1727 = vmatpush1.bf16.msra.mxu0 0
        %1728 = vmatprep.subr.bf16.mxu0 0
        %1729 = vmatpush1.bf16.msra.mxu0 0
        %1730 = vmatprep.subr.bf16.mxu0 0
        %1731 = vmatpush1.bf16.msra.mxu0 0
        %1732 = vmatprep.subr.bf16.mxu0 0
        %1733 = vmatpush1.bf16.msra.mxu0 0
        %1734 = vmatprep.mubr.bf16.mxu0 0
        %1735 = vmatmul.mubr.bf16.gmra.mrb[0].mxu0 %v1697
        %v1736 = vpop.f32.mrb[0].mxu0
        %v1737 = vadd.f32 0.0, %v1736
        %v1738 = vpop.f32.mrb[0].mxu0
        %v1739 = vpop.f32.mrb[0].mxu0
        %v1740 = vpop.f32.mrb[0].mxu0
        %1741 = vdwg.mxu0
        %1742 = vrot.lane.b32.xlu0 %v344, 96
        %v1743 = vpop.permute.xlu0 %1742
        %v1745 = vsel %vm542, %v1597, 0
        %v1748 = vsel %vm594, %v1743, 0
        %1750 = vmatprep.subr.bf16.mxu0 0
        %1751 = vmatpush1.bf16.msra.mxu0 %v1748
        %1752 = vmatprep.subr.bf16.mxu0 0
        %1753 = vmatpush1.bf16.msra.mxu0 0
        %1754 = vmatprep.subr.bf16.mxu0 0
        %1755 = vmatpush1.bf16.msra.mxu0 0
        %1756 = vmatprep.subr.bf16.mxu0 0
        %1757 = vmatpush1.bf16.msra.mxu0 0
        %1758 = vmatprep.subr.bf16.mxu0 0
        %1759 = vmatpush1.bf16.msra.mxu0 0
        %1760 = vmatprep.subr.bf16.mxu0 0
        %1761 = vmatpush1.bf16.msra.mxu0 0
        %1762 = vmatprep.subr.bf16.mxu0 0
        %1763 = vmatpush1.bf16.msra.mxu0 0
        %1764 = vmatprep.subr.bf16.mxu0 0
        %1765 = vmatpush1.bf16.msra.mxu0 0
        %1766 = vmatprep.subr.bf16.mxu0 0
        %1767 = vmatpush1.bf16.msra.mxu0 0
        %1768 = vmatprep.subr.bf16.mxu0 0
        %1769 = vmatpush1.bf16.msra.mxu0 0
        %1770 = vmatprep.subr.bf16.mxu0 0
        %1771 = vmatpush1.bf16.msra.mxu0 0
        %1772 = vmatprep.subr.bf16.mxu0 0
        %1773 = vmatpush1.bf16.msra.mxu0 0
        %1774 = vmatprep.subr.bf16.mxu0 0
        %1775 = vmatpush1.bf16.msra.mxu0 0
        %1776 = vmatprep.subr.bf16.mxu0 0
        %1777 = vmatpush1.bf16.msra.mxu0 0
        %1778 = vmatprep.subr.bf16.mxu0 0
        %1779 = vmatpush1.bf16.msra.mxu0 0
        %1780 = vmatprep.subr.bf16.mxu0 0
        %1781 = vmatpush1.bf16.msra.mxu0 0
        %1782 = vmatprep.mubr.bf16.mxu0 0
        %1783 = vmatmul.mubr.bf16.gmra.mrb[0].mxu0 %v1745
        %v1784 = vpop.f32.mrb[0].mxu0
        %v1785 = vadd.f32 0.0, %v1784
        %v1786 = vpop.f32.mrb[0].mxu0
        %v1787 = vpop.f32.mrb[0].mxu0
        %v1788 = vpop.f32.mrb[0].mxu0
        %1789 = vdwg.mxu0
        %v1790 = vpack.c.bf16 %v1689, %v1641
        %v1791 = vpack.c.bf16 %v1785, %v1737
        %v1792 = vld [vmem:[%s3 + $0x10] sm:$0xf]
        %v1793 = vld [vmem:[%s3 + $0x14] sm:$0xf]
        %v1796 = vunpack.c.l.b16 %v1792
        %v1797 = vunpack.c.l.b16 %v1793
        %v1798 = vpack.c.b16 %v1797, %v1796
        %v1801 = vsel %vm348, %v1790, 0
        %v1804 = vsel %vm348, %v1791, 0
        %1806 = vmatprep.subr.bf16.mxu0 0
        %1807 = vmatpush1.bf16.msra.mxu0 %v1798
        %1808 = vmatprep.subr.bf16.mxu0 0
        %1809 = vmatpush1.bf16.msra.mxu0 0
        %1810 = vmatprep.subr.bf16.mxu0 0
        %1811 = vmatpush1.bf16.msra.mxu0 0
        %1812 = vmatprep.subr.bf16.mxu0 0
        %1813 = vmatpush1.bf16.msra.mxu0 0
        %1814 = vmatprep.subr.bf16.mxu0 0
        %1815 = vmatpush1.bf16.msra.mxu0 0
        %1816 = vmatprep.subr.bf16.mxu0 0
        %1817 = vmatpush1.bf16.msra.mxu0 0
        %1818 = vmatprep.subr.bf16.mxu0 0
        %1819 = vmatpush1.bf16.msra.mxu0 0
        %1820 = vmatprep.subr.bf16.mxu0 0
        %1821 = vmatpush1.bf16.msra.mxu0 0
        %1822 = vmatprep.subr.bf16.mxu0 0
        %1823 = vmatpush1.bf16.msra.mxu0 0
        %1824 = vmatprep.subr.bf16.mxu0 0
        %1825 = vmatpush1.bf16.msra.mxu0 0
        %1826 = vmatprep.subr.bf16.mxu0 0
        %1827 = vmatpush1.bf16.msra.mxu0 0
        %1828 = vmatprep.subr.bf16.mxu0 0
        %1829 = vmatpush1.bf16.msra.mxu0 0
        %1830 = vmatprep.subr.bf16.mxu0 0
        %1831 = vmatpush1.bf16.msra.mxu0 0
        %1832 = vmatprep.subr.bf16.mxu0 0
        %1833 = vmatpush1.bf16.msra.mxu0 0
        %1834 = vmatprep.subr.bf16.mxu0 0
        %1835 = vmatpush1.bf16.msra.mxu0 0
        %1836 = vmatprep.subr.bf16.mxu0 0
        %1837 = vmatpush1.bf16.msra.mxu0 0
        %1838 = vmatprep.mubr.bf16.mxu0 0
        %1839 = vmatmul.mubr.bf16.gmra.mrb[0].mxu0 %v1801
        %v1840 = vpop.f32.mrb[0].mxu0
        %v1841 = vadd.f32 0.0, %v1840
        %v1842 = vpop.f32.mrb[0].mxu0
        %v1843 = vpop.f32.mrb[0].mxu0
        %v1844 = vadd.f32 0.0, %v1843
        %v1845 = vpop.f32.mrb[0].mxu0
        %1846 = vmatprep.mubr.bf16.mxu0 0
        %1847 = vmatmul.mubr.bf16.gmra.mrb[0].mxu0 %v1804
        %v1848 = vpop.f32.mrb[0].mxu0
        %v1849 = vadd.f32 0.0, %v1848
        %v1850 = vpop.f32.mrb[0].mxu0
        %v1851 = vpop.f32.mrb[0].mxu0
        %v1852 = vadd.f32 0.0, %v1851
        %v1853 = vpop.f32.mrb[0].mxu0
        %1854 = vdwg.mxu0
        %v1855 = vadd.f32 %v1336, %v1841
        %v1856 = vadd.f32 %v1339, %v1844
        %v1857 = vadd.f32 %v1344, %v1849
        %v1858 = vadd.f32 %v1347, %v1852
        %1859 = vrot.lane.b32.xlu0 %v337, 80
        %v1860 = vpop.permute.xlu0 %1859
        %1861 = vrot.lane.b32.xlu0 %v337, 16
        %v1862 = vpop.permute.xlu0 %1861
        %v1864 = vsel %vm348, %v1860, 0
        %v1867 = vsel %vm348, %v1862, 0
        %1869 = vmatprep.subr.bf16.mxu0 0
        %1870 = vmatpush1.bf16.xpose.msra.mxu0 %v1867
        %1871 = vmatprep.subr.bf16.mxu0 0
        %1872 = vmatpush1.bf16.xpose.msra.mxu0 0
        %1873 = vmatprep.subr.bf16.mxu0 0
        %1874 = vmatpush1.bf16.xpose.msra.mxu0 0
        %1875 = vmatprep.subr.bf16.mxu0 0
        %1876 = vmatpush1.bf16.xpose.msra.mxu0 0
        %1877 = vmatprep.subr.bf16.mxu0 0
        %1878 = vmatpush1.bf16.xpose.msra.mxu0 0
        %1879 = vmatprep.subr.bf16.mxu0 0
        %1880 = vmatpush1.bf16.xpose.msra.mxu0 0
        %1881 = vmatprep.subr.bf16.mxu0 0
        %1882 = vmatpush1.bf16.xpose.msra.mxu0 0
        %1883 = vmatprep.subr.bf16.mxu0 0
        %1884 = vmatpush1.bf16.xpose.msra.mxu0 0
        %1885 = vmatprep.subr.bf16.mxu0 0
        %1886 = vmatpush1.bf16.xpose.msra.mxu0 0
        %1887 = vmatprep.subr.bf16.mxu0 0
        %1888 = vmatpush1.bf16.xpose.msra.mxu0 0
        %1889 = vmatprep.subr.bf16.mxu0 0
        %1890 = vmatpush1.bf16.xpose.msra.mxu0 0
        %1891 = vmatprep.subr.bf16.mxu0 0
        %1892 = vmatpush1.bf16.xpose.msra.mxu0 0
        %1893 = vmatprep.subr.bf16.mxu0 0
        %1894 = vmatpush1.bf16.xpose.msra.mxu0 0
        %1895 = vmatprep.subr.bf16.mxu0 0
        %1896 = vmatpush1.bf16.xpose.msra.mxu0 0
        %1897 = vmatprep.subr.bf16.mxu0 0
        %1898 = vmatpush1.bf16.xpose.msra.mxu0 0
        %1899 = vmatprep.subr.bf16.mxu0 0
        %1900 = vmatpush1.bf16.xpose.msra.mxu0 0
        %1901 = vmatprep.mubr.bf16.mxu0 0
        %1902 = vmatmul.mubr.bf16.gmra.mrb[0].mxu0 %v1864
        %v1903 = vpop.f32.mrb[0].mxu0
        %v1904 = vadd.f32 %v336, %v1903
        %v1905 = vpop.f32.mrb[0].mxu0
        %v1906 = vpop.f32.mrb[0].mxu0
        %v1907 = vpop.f32.mrb[0].mxu0
        %1908 = vdwg.mxu0
        %1909 = vrot.lane.b32.xlu0 %v338, 80
        %v1910 = vpop.permute.xlu0 %1909
        %1911 = vrot.lane.b32.xlu0 %v338, 16
        %v1912 = vpop.permute.xlu0 %1911
        %v1914 = vsel %vm348, %v1910, 0
        %v1917 = vsel %vm348, %v1912, 0
        %1919 = vmatprep.subr.bf16.mxu0 0
        %1920 = vmatpush1.bf16.xpose.msra.mxu0 %v1917
        %1921 = vmatprep.subr.bf16.mxu0 0
        %1922 = vmatpush1.bf16.xpose.msra.mxu0 0
        %1923 = vmatprep.subr.bf16.mxu0 0
        %1924 = vmatpush1.bf16.xpose.msra.mxu0 0
        %1925 = vmatprep.subr.bf16.mxu0 0
        %1926 = vmatpush1.bf16.xpose.msra.mxu0 0
        %1927 = vmatprep.subr.bf16.mxu0 0
        %1928 = vmatpush1.bf16.xpose.msra.mxu0 0
        %1929 = vmatprep.subr.bf16.mxu0 0
        %1930 = vmatpush1.bf16.xpose.msra.mxu0 0
        %1931 = vmatprep.subr.bf16.mxu0 0
        %1932 = vmatpush1.bf16.xpose.msra.mxu0 0
        %1933 = vmatprep.subr.bf16.mxu0 0
        %1934 = vmatpush1.bf16.xpose.msra.mxu0 0
        %1935 = vmatprep.subr.bf16.mxu0 0
        %1936 = vmatpush1.bf16.xpose.msra.mxu0 0
        %1937 = vmatprep.subr.bf16.mxu0 0
        %1938 = vmatpush1.bf16.xpose.msra.mxu0 0
        %1939 = vmatprep.subr.bf16.mxu0 0
        %1940 = vmatpush1.bf16.xpose.msra.mxu0 0
        %1941 = vmatprep.subr.bf16.mxu0 0
        %1942 = vmatpush1.bf16.xpose.msra.mxu0 0
        %1943 = vmatprep.subr.bf16.mxu0 0
        %1944 = vmatpush1.bf16.xpose.msra.mxu0 0
        %1945 = vmatprep.subr.bf16.mxu0 0
        %1946 = vmatpush1.bf16.xpose.msra.mxu0 0
        %1947 = vmatprep.subr.bf16.mxu0 0
        %1948 = vmatpush1.bf16.xpose.msra.mxu0 0
        %1949 = vmatprep.subr.bf16.mxu0 0
        %1950 = vmatpush1.bf16.xpose.msra.mxu0 0
        %1951 = vmatprep.mubr.bf16.mxu0 0
        %1952 = vmatmul.mubr.bf16.gmra.mrb[0].mxu0 %v1914
        %v1953 = vpop.f32.mrb[0].mxu0
        %v1954 = vadd.f32 %v336, %v1953
        %v1955 = vpop.f32.mrb[0].mxu0
        %v1956 = vpop.f32.mrb[0].mxu0
        %v1957 = vpop.f32.mrb[0].mxu0
        %1958 = vdwg.mxu0
        %1959 = vrot.lane.b32.xlu0 %v339, 80
        %v1960 = vpop.permute.xlu0 %1959
        %1961 = vrot.lane.b32.xlu0 %v339, 16
        %v1962 = vpop.permute.xlu0 %1961
        %v1964 = vsel %vm348, %v1960, 0
        %v1967 = vsel %vm348, %v1962, 0
        %1969 = vmatprep.subr.bf16.mxu0 0
        %1970 = vmatpush1.bf16.xpose.msra.mxu0 %v1967
        %1971 = vmatprep.subr.bf16.mxu0 0
        %1972 = vmatpush1.bf16.xpose.msra.mxu0 0
        %1973 = vmatprep.subr.bf16.mxu0 0
        %1974 = vmatpush1.bf16.xpose.msra.mxu0 0
        %1975 = vmatprep.subr.bf16.mxu0 0
        %1976 = vmatpush1.bf16.xpose.msra.mxu0 0
        %1977 = vmatprep.subr.bf16.mxu0 0
        %1978 = vmatpush1.bf16.xpose.msra.mxu0 0
        %1979 = vmatprep.subr.bf16.mxu0 0
        %1980 = vmatpush1.bf16.xpose.msra.mxu0 0
        %1981 = vmatprep.subr.bf16.mxu0 0
        %1982 = vmatpush1.bf16.xpose.msra.mxu0 0
        %1983 = vmatprep.subr.bf16.mxu0 0
        %1984 = vmatpush1.bf16.xpose.msra.mxu0 0
        %1985 = vmatprep.subr.bf16.mxu0 0
        %1986 = vmatpush1.bf16.xpose.msra.mxu0 0
        %1987 = vmatprep.subr.bf16.mxu0 0
        %1988 = vmatpush1.bf16.xpose.msra.mxu0 0
        %1989 = vmatprep.subr.bf16.mxu0 0
        %1990 = vmatpush1.bf16.xpose.msra.mxu0 0
        %1991 = vmatprep.subr.bf16.mxu0 0
        %1992 = vmatpush1.bf16.xpose.msra.mxu0 0
        %1993 = vmatprep.subr.bf16.mxu0 0
        %1994 = vmatpush1.bf16.xpose.msra.mxu0 0
        %1995 = vmatprep.subr.bf16.mxu0 0
        %1996 = vmatpush1.bf16.xpose.msra.mxu0 0
        %1997 = vmatprep.subr.bf16.mxu0 0
        %1998 = vmatpush1.bf16.xpose.msra.mxu0 0
        %1999 = vmatprep.subr.bf16.mxu0 0
        %2000 = vmatpush1.bf16.xpose.msra.mxu0 0
        %2001 = vmatprep.mubr.bf16.mxu0 0
        %2002 = vmatmul.mubr.bf16.gmra.mrb[0].mxu0 %v1964
        %v2003 = vpop.f32.mrb[0].mxu0
        %v2004 = vadd.f32 %v336, %v2003
        %v2005 = vpop.f32.mrb[0].mxu0
        %v2006 = vpop.f32.mrb[0].mxu0
        %v2007 = vpop.f32.mrb[0].mxu0
        %2008 = vdwg.mxu0
        %2009 = vrot.lane.b32.xlu0 %v340, 80
        %v2010 = vpop.permute.xlu0 %2009
        %2011 = vrot.lane.b32.xlu0 %v340, 16
        %v2012 = vpop.permute.xlu0 %2011
        %v2014 = vsel %vm348, %v2010, 0
        %v2017 = vsel %vm348, %v2012, 0
        %2019 = vmatprep.subr.bf16.mxu0 0
        %2020 = vmatpush1.bf16.xpose.msra.mxu0 %v2017
        %2021 = vmatprep.subr.bf16.mxu0 0
        %2022 = vmatpush1.bf16.xpose.msra.mxu0 0
        %2023 = vmatprep.subr.bf16.mxu0 0
        %2024 = vmatpush1.bf16.xpose.msra.mxu0 0
        %2025 = vmatprep.subr.bf16.mxu0 0
        %2026 = vmatpush1.bf16.xpose.msra.mxu0 0
        %2027 = vmatprep.subr.bf16.mxu0 0
        %2028 = vmatpush1.bf16.xpose.msra.mxu0 0
        %2029 = vmatprep.subr.bf16.mxu0 0
        %2030 = vmatpush1.bf16.xpose.msra.mxu0 0
        %2031 = vmatprep.subr.bf16.mxu0 0
        %2032 = vmatpush1.bf16.xpose.msra.mxu0 0
        %2033 = vmatprep.subr.bf16.mxu0 0
        %2034 = vmatpush1.bf16.xpose.msra.mxu0 0
        %2035 = vmatprep.subr.bf16.mxu0 0
        %2036 = vmatpush1.bf16.xpose.msra.mxu0 0
        %2037 = vmatprep.subr.bf16.mxu0 0
        %2038 = vmatpush1.bf16.xpose.msra.mxu0 0
        %2039 = vmatprep.subr.bf16.mxu0 0
        %2040 = vmatpush1.bf16.xpose.msra.mxu0 0
        %2041 = vmatprep.subr.bf16.mxu0 0
        %2042 = vmatpush1.bf16.xpose.msra.mxu0 0
        %2043 = vmatprep.subr.bf16.mxu0 0
        %2044 = vmatpush1.bf16.xpose.msra.mxu0 0
        %2045 = vmatprep.subr.bf16.mxu0 0
        %2046 = vmatpush1.bf16.xpose.msra.mxu0 0
        %2047 = vmatprep.subr.bf16.mxu0 0
        %2048 = vmatpush1.bf16.xpose.msra.mxu0 0
        %2049 = vmatprep.subr.bf16.mxu0 0
        %2050 = vmatpush1.bf16.xpose.msra.mxu0 0
        %2051 = vmatprep.mubr.bf16.mxu0 0
        %2052 = vmatmul.mubr.bf16.gmra.mrb[0].mxu0 %v2014
        %v2053 = vpop.f32.mrb[0].mxu0
        %v2054 = vadd.f32 %v336, %v2053
        %v2055 = vpop.f32.mrb[0].mxu0
        %v2056 = vpop.f32.mrb[0].mxu0
        %v2057 = vpop.f32.mrb[0].mxu0
        %2058 = vdwg.mxu0
        %v2059 = vsel %vm542, %v1904, -inf
        %2060 = vmax.xlane.f32.xlu0 %v2059
        %v2061 = vpop.xlane.xlu0 %2060
        %v2062 = vsel %vm542, %v1954, -inf
        %2063 = vmax.xlane.f32.xlu0 %v2062
        %v2064 = vpop.xlane.xlu0 %2063
        %v2065 = vsel %vm542, %v2004, -inf
        %2066 = vmax.xlane.f32.xlu0 %v2065
        %v2067 = vpop.xlane.xlu0 %2066
        %v2068 = vsel %vm542, %v2054, -inf
        %2069 = vmax.xlane.f32.xlu0 %v2068
        %v2070 = vpop.xlane.xlu0 %2069
        %v2071 = vsub.f32 %v1904, %v2061
        %v2072 = vsub.f32 %v1954, %v2064
        %v2073 = vsub.f32 %v2004, %v2067
        %v2074 = vsub.f32 %v2054, %v2070
        %v2075 = vmul.f32 %v2071, 1.442695
        %v2076 = vpow.pop %v2075
        %v2077 = vmul.f32 %v2072, 1.442695
        %v2078 = vpow.pop %v2077
        %v2079 = vmul.f32 %v2073, 1.442695
        %v2080 = vpow.pop %v2079
        %v2081 = vmul.f32 %v2074, 1.442695
        %v2082 = vpow.pop %v2081
        %v2083 = vsel %vm542, %v2076, 0.0
        %2084 = vadd.xlane.f32.xlu0 %v2083
        %v2085 = vpop.xlane.xlu0 %2084
        %v2086 = vsel %vm542, %v2078, 0.0
        %2087 = vadd.xlane.f32.xlu0 %v2086
        %v2088 = vpop.xlane.xlu0 %2087
        %v2089 = vsel %vm542, %v2080, 0.0
        %2090 = vadd.xlane.f32.xlu0 %v2089
        %v2091 = vpop.xlane.xlu0 %2090
        %v2092 = vsel %vm542, %v2082, 0.0
        %2093 = vadd.xlane.f32.xlu0 %v2092
        %v2094 = vpop.xlane.xlu0 %2093
        %v2095 = vrcp.pop %v2085
        %v2096 = vrcp.pop %v2088
        %v2097 = vrcp.pop %v2091
        %v2098 = vrcp.pop %v2094
        %v2099 = vmul.f32 %v2076, %v2095
        %v2100 = vmul.f32 %v2078, %v2096
        %v2101 = vmul.f32 %v2080, %v2097
        %v2102 = vmul.f32 %v2082, %v2098
        %v2103 = vpack.c.bf16 %v2099, %v2099
        %v2104 = vpack.c.bf16 %v2100, %v2100
        %v2105 = vpack.c.bf16 %v2101, %v2101
        %v2106 = vpack.c.bf16 %v2102, %v2102
        %2107 = vrot.lane.b32.xlu0 %v341, 80
        %v2108 = vpop.permute.xlu0 %2107
        %v2110 = vsel %vm542, %v2103, 0
        %v2113 = vsel %vm594, %v2108, 0
        %2115 = vmatprep.subr.bf16.mxu0 0
        %2116 = vmatpush1.bf16.msra.mxu0 %v2113
        %2117 = vmatprep.subr.bf16.mxu0 0
        %2118 = vmatpush1.bf16.msra.mxu0 0
        %2119 = vmatprep.subr.bf16.mxu0 0
        %2120 = vmatpush1.bf16.msra.mxu0 0
        %2121 = vmatprep.subr.bf16.mxu0 0
        %2122 = vmatpush1.bf16.msra.mxu0 0
        %2123 = vmatprep.subr.bf16.mxu0 0
        %2124 = vmatpush1.bf16.msra.mxu0 0
        %2125 = vmatprep.subr.bf16.mxu0 0
        %2126 = vmatpush1.bf16.msra.mxu0 0
        %2127 = vmatprep.subr.bf16.mxu0 0
        %2128 = vmatpush1.bf16.msra.mxu0 0
        %2129 = vmatprep.subr.bf16.mxu0 0
        %2130 = vmatpush1.bf16.msra.mxu0 0
        %2131 = vmatprep.subr.bf16.mxu0 0
        %2132 = vmatpush1.bf16.msra.mxu0 0
        %2133 = vmatprep.subr.bf16.mxu0 0
        %2134 = vmatpush1.bf16.msra.mxu0 0
        %2135 = vmatprep.subr.bf16.mxu0 0
        %2136 = vmatpush1.bf16.msra.mxu0 0
        %2137 = vmatprep.subr.bf16.mxu0 0
        %2138 = vmatpush1.bf16.msra.mxu0 0
        %2139 = vmatprep.subr.bf16.mxu0 0
        %2140 = vmatpush1.bf16.msra.mxu0 0
        %2141 = vmatprep.subr.bf16.mxu0 0
        %2142 = vmatpush1.bf16.msra.mxu0 0
        %2143 = vmatprep.subr.bf16.mxu0 0
        %2144 = vmatpush1.bf16.msra.mxu0 0
        %2145 = vmatprep.subr.bf16.mxu0 0
        %2146 = vmatpush1.bf16.msra.mxu0 0
        %2147 = vmatprep.mubr.bf16.mxu0 0
        %2148 = vmatmul.mubr.bf16.gmra.mrb[0].mxu0 %v2110
        %v2149 = vpop.f32.mrb[0].mxu0
        %v2150 = vadd.f32 0.0, %v2149
        %v2151 = vpop.f32.mrb[0].mxu0
        %v2152 = vpop.f32.mrb[0].mxu0
        %v2153 = vpop.f32.mrb[0].mxu0
        %2154 = vdwg.mxu0
        %2155 = vrot.lane.b32.xlu0 %v342, 80
        %v2156 = vpop.permute.xlu0 %2155
        %v2158 = vsel %vm542, %v2104, 0
        %v2161 = vsel %vm594, %v2156, 0
        %2163 = vmatprep.subr.bf16.mxu0 0
        %2164 = vmatpush1.bf16.msra.mxu0 %v2161
        %2165 = vmatprep.subr.bf16.mxu0 0
        %2166 = vmatpush1.bf16.msra.mxu0 0
        %2167 = vmatprep.subr.bf16.mxu0 0
        %2168 = vmatpush1.bf16.msra.mxu0 0
        %2169 = vmatprep.subr.bf16.mxu0 0
        %2170 = vmatpush1.bf16.msra.mxu0 0
        %2171 = vmatprep.subr.bf16.mxu0 0
        %2172 = vmatpush1.bf16.msra.mxu0 0
        %2173 = vmatprep.subr.bf16.mxu0 0
        %2174 = vmatpush1.bf16.msra.mxu0 0
        %2175 = vmatprep.subr.bf16.mxu0 0
        %2176 = vmatpush1.bf16.msra.mxu0 0
        %2177 = vmatprep.subr.bf16.mxu0 0
        %2178 = vmatpush1.bf16.msra.mxu0 0
        %2179 = vmatprep.subr.bf16.mxu0 0
        %2180 = vmatpush1.bf16.msra.mxu0 0
        %2181 = vmatprep.subr.bf16.mxu0 0
        %2182 = vmatpush1.bf16.msra.mxu0 0
        %2183 = vmatprep.subr.bf16.mxu0 0
        %2184 = vmatpush1.bf16.msra.mxu0 0
        %2185 = vmatprep.subr.bf16.mxu0 0
        %2186 = vmatpush1.bf16.msra.mxu0 0
        %2187 = vmatprep.subr.bf16.mxu0 0
        %2188 = vmatpush1.bf16.msra.mxu0 0
        %2189 = vmatprep.subr.bf16.mxu0 0
        %2190 = vmatpush1.bf16.msra.mxu0 0
        %2191 = vmatprep.subr.bf16.mxu0 0
        %2192 = vmatpush1.bf16.msra.mxu0 0
        %2193 = vmatprep.subr.bf16.mxu0 0
        %2194 = vmatpush1.bf16.msra.mxu0 0
        %2195 = vmatprep.mubr.bf16.mxu0 0
        %2196 = vmatmul.mubr.bf16.gmra.mrb[0].mxu0 %v2158
        %v2197 = vpop.f32.mrb[0].mxu0
        %v2198 = vadd.f32 0.0, %v2197
        %v2199 = vpop.f32.mrb[0].mxu0
        %v2200 = vpop.f32.mrb[0].mxu0
        %v2201 = vpop.f32.mrb[0].mxu0
        %2202 = vdwg.mxu0
        %2203 = vrot.lane.b32.xlu0 %v343, 80
        %v2204 = vpop.permute.xlu0 %2203
        %v2206 = vsel %vm542, %v2105, 0
        %v2209 = vsel %vm594, %v2204, 0
        %2211 = vmatprep.subr.bf16.mxu0 0
        %2212 = vmatpush1.bf16.msra.mxu0 %v2209
        %2213 = vmatprep.subr.bf16.mxu0 0
        %2214 = vmatpush1.bf16.msra.mxu0 0
        %2215 = vmatprep.subr.bf16.mxu0 0
        %2216 = vmatpush1.bf16.msra.mxu0 0
        %2217 = vmatprep.subr.bf16.mxu0 0
        %2218 = vmatpush1.bf16.msra.mxu0 0
        %2219 = vmatprep.subr.bf16.mxu0 0
        %2220 = vmatpush1.bf16.msra.mxu0 0
        %2221 = vmatprep.subr.bf16.mxu0 0
        %2222 = vmatpush1.bf16.msra.mxu0 0
        %2223 = vmatprep.subr.bf16.mxu0 0
        %2224 = vmatpush1.bf16.msra.mxu0 0
        %2225 = vmatprep.subr.bf16.mxu0 0
        %2226 = vmatpush1.bf16.msra.mxu0 0
        %2227 = vmatprep.subr.bf16.mxu0 0
        %2228 = vmatpush1.bf16.msra.mxu0 0
        %2229 = vmatprep.subr.bf16.mxu0 0
        %2230 = vmatpush1.bf16.msra.mxu0 0
        %2231 = vmatprep.subr.bf16.mxu0 0
        %2232 = vmatpush1.bf16.msra.mxu0 0
        %2233 = vmatprep.subr.bf16.mxu0 0
        %2234 = vmatpush1.bf16.msra.mxu0 0
        %2235 = vmatprep.subr.bf16.mxu0 0
        %2236 = vmatpush1.bf16.msra.mxu0 0
        %2237 = vmatprep.subr.bf16.mxu0 0
        %2238 = vmatpush1.bf16.msra.mxu0 0
        %2239 = vmatprep.subr.bf16.mxu0 0
        %2240 = vmatpush1.bf16.msra.mxu0 0
        %2241 = vmatprep.subr.bf16.mxu0 0
        %2242 = vmatpush1.bf16.msra.mxu0 0
        %2243 = vmatprep.mubr.bf16.mxu0 0
        %2244 = vmatmul.mubr.bf16.gmra.mrb[0].mxu0 %v2206
        %v2245 = vpop.f32.mrb[0].mxu0
        %v2246 = vadd.f32 0.0, %v2245
        %v2247 = vpop.f32.mrb[0].mxu0
        %v2248 = vpop.f32.mrb[0].mxu0
        %v2249 = vpop.f32.mrb[0].mxu0
        %2250 = vdwg.mxu0
        %2251 = vrot.lane.b32.xlu0 %v344, 80
        %v2252 = vpop.permute.xlu0 %2251
        %v2254 = vsel %vm542, %v2106, 0
        %v2257 = vsel %vm594, %v2252, 0
        %2259 = vmatprep.subr.bf16.mxu0 0
        %2260 = vmatpush1.bf16.msra.mxu0 %v2257
        %2261 = vmatprep.subr.bf16.mxu0 0
        %2262 = vmatpush1.bf16.msra.mxu0 0
        %2263 = vmatprep.subr.bf16.mxu0 0
        %2264 = vmatpush1.bf16.msra.mxu0 0
        %2265 = vmatprep.subr.bf16.mxu0 0
        %2266 = vmatpush1.bf16.msra.mxu0 0
        %2267 = vmatprep.subr.bf16.mxu0 0
        %2268 = vmatpush1.bf16.msra.mxu0 0
        %2269 = vmatprep.subr.bf16.mxu0 0
        %2270 = vmatpush1.bf16.msra.mxu0 0
        %2271 = vmatprep.subr.bf16.mxu0 0
        %2272 = vmatpush1.bf16.msra.mxu0 0
        %2273 = vmatprep.subr.bf16.mxu0 0
        %2274 = vmatpush1.bf16.msra.mxu0 0
        %2275 = vmatprep.subr.bf16.mxu0 0
        %2276 = vmatpush1.bf16.msra.mxu0 0
        %2277 = vmatprep.subr.bf16.mxu0 0
        %2278 = vmatpush1.bf16.msra.mxu0 0
        %2279 = vmatprep.subr.bf16.mxu0 0
        %2280 = vmatpush1.bf16.msra.mxu0 0
        %2281 = vmatprep.subr.bf16.mxu0 0
        %2282 = vmatpush1.bf16.msra.mxu0 0
        %2283 = vmatprep.subr.bf16.mxu0 0
        %2284 = vmatpush1.bf16.msra.mxu0 0
        %2285 = vmatprep.subr.bf16.mxu0 0
        %2286 = vmatpush1.bf16.msra.mxu0 0
        %2287 = vmatprep.subr.bf16.mxu0 0
        %2288 = vmatpush1.bf16.msra.mxu0 0
        %2289 = vmatprep.subr.bf16.mxu0 0
        %2290 = vmatpush1.bf16.msra.mxu0 0
        %2291 = vmatprep.mubr.bf16.mxu0 0
        %2292 = vmatmul.mubr.bf16.gmra.mrb[0].mxu0 %v2254
        %v2293 = vpop.f32.mrb[0].mxu0
        %v2294 = vadd.f32 0.0, %v2293
        %v2295 = vpop.f32.mrb[0].mxu0
        %v2296 = vpop.f32.mrb[0].mxu0
        %v2297 = vpop.f32.mrb[0].mxu0
        %2298 = vdwg.mxu0
        %v2299 = vpack.c.bf16 %v2198, %v2150
        %v2300 = vpack.c.bf16 %v2294, %v2246
        %v2301 = vld [vmem:[%s3 + $0x18] sm:$0xf]
        %v2302 = vld [vmem:[%s3 + $0x1c] sm:$0xf]
        %v2305 = vunpack.c.l.b16 %v2301
        %v2306 = vunpack.c.l.b16 %v2302
        %v2307 = vpack.c.b16 %v2306, %v2305
        %v2310 = vsel %vm348, %v2299, 0
        %v2313 = vsel %vm348, %v2300, 0
        %2315 = vmatprep.subr.bf16.mxu0 0
        %2316 = vmatpush1.bf16.msra.mxu0 %v2307
        %2317 = vmatprep.subr.bf16.mxu0 0
        %2318 = vmatpush1.bf16.msra.mxu0 0
        %2319 = vmatprep.subr.bf16.mxu0 0
        %2320 = vmatpush1.bf16.msra.mxu0 0
        %2321 = vmatprep.subr.bf16.mxu0 0
        %2322 = vmatpush1.bf16.msra.mxu0 0
        %2323 = vmatprep.subr.bf16.mxu0 0
        %2324 = vmatpush1.bf16.msra.mxu0 0
        %2325 = vmatprep.subr.bf16.mxu0 0
        %2326 = vmatpush1.bf16.msra.mxu0 0
        %2327 = vmatprep.subr.bf16.mxu0 0
        %2328 = vmatpush1.bf16.msra.mxu0 0
        %2329 = vmatprep.subr.bf16.mxu0 0
        %2330 = vmatpush1.bf16.msra.mxu0 0
        %2331 = vmatprep.subr.bf16.mxu0 0
        %2332 = vmatpush1.bf16.msra.mxu0 0
        %2333 = vmatprep.subr.bf16.mxu0 0
        %2334 = vmatpush1.bf16.msra.mxu0 0
        %2335 = vmatprep.subr.bf16.mxu0 0
        %2336 = vmatpush1.bf16.msra.mxu0 0
        %2337 = vmatprep.subr.bf16.mxu0 0
        %2338 = vmatpush1.bf16.msra.mxu0 0
        %2339 = vmatprep.subr.bf16.mxu0 0
        %2340 = vmatpush1.bf16.msra.mxu0 0
        %2341 = vmatprep.subr.bf16.mxu0 0
        %2342 = vmatpush1.bf16.msra.mxu0 0
        %2343 = vmatprep.subr.bf16.mxu0 0
        %2344 = vmatpush1.bf16.msra.mxu0 0
        %2345 = vmatprep.subr.bf16.mxu0 0
        %2346 = vmatpush1.bf16.msra.mxu0 0
        %2347 = vmatprep.mubr.bf16.mxu0 0
        %2348 = vmatmul.mubr.bf16.gmra.mrb[0].mxu0 %v2310
        %v2349 = vpop.f32.mrb[0].mxu0
        %v2350 = vadd.f32 0.0, %v2349
        %v2351 = vpop.f32.mrb[0].mxu0
        %v2352 = vpop.f32.mrb[0].mxu0
        %v2353 = vadd.f32 0.0, %v2352
        %v2354 = vpop.f32.mrb[0].mxu0
        %2355 = vmatprep.mubr.bf16.mxu0 0
        %2356 = vmatmul.mubr.bf16.gmra.mrb[0].mxu0 %v2313
        %v2357 = vpop.f32.mrb[0].mxu0
        %v2358 = vadd.f32 0.0, %v2357
        %v2359 = vpop.f32.mrb[0].mxu0
        %v2360 = vpop.f32.mrb[0].mxu0
        %v2361 = vadd.f32 0.0, %v2360
        %v2362 = vpop.f32.mrb[0].mxu0
        %2363 = vdwg.mxu0
        %v2364 = vadd.f32 %v1855, %v2350
        %v2365 = vadd.f32 %v1856, %v2353
        %v2366 = vadd.f32 %v1857, %v2358
        %v2367 = vadd.f32 %v1858, %v2361
        %v2368 = vld [vmem:[%s4] sm:$0x1]
        %v2370 = vlaneseq
        %v2371 = vshrl.u32 %v2370, 7
        %v2372 = vsub.s32 0, %v2371
        %v2373 = vrot.slane %v2368, %v2372
        %v2375 = vadd.f32 %v2364, %v2373
        %v2376 = vadd.f32 %v2365, %v2373
        %v2377 = vadd.f32 %v2366, %v2373
        %v2378 = vadd.f32 %v2367, %v2373
        %2379 = vst.msk [vmem:[%s242] sm:$0xff] %vm276, %v2375
        %2380 = vst.msk [vmem:[%s242 + $0x8] sm:$0xff] %vm276, %v2376
        %2381 = vst.msk [vmem:[%s242 + $0x10] sm:$0xff] %vm276, %v2377
        %2382 = vst.msk [vmem:[%s242 + $0x18] sm:$0xff] %vm276, %v2378
        %s2383 = sand.u32 %s140, 1
        %s2384 = scalar_lea.sflag [#allocation4], %s2383
        %s2385 = sand.u32 %s140, 1
        %s2386 = smul.addr %s2385, 32
        %s2387 = scalar_lea.vmem [#allocation5], %s2386
        // Predicated region
        $region45: #{attention_forward.1} parent=39 // pred_check
          %p2388 = pneg %p150
        $region46: #{attention_forward.1} parent=39 // pred_check_branch
          %2390 = sbr.rel (%p2388) target = $region48
        $region47: #{attention_forward.1} parent=39 // pred_region
          %s2391 = smul.u32 4, %s22
          %s2393 = ssub.s32 512, 512
          %2394 = vsyncadd %s2384, %s2393
          %s2395 = smul.addr %s2391, 128
          %s2396 = scalar_lea.hbm %s5, %s2395
          %s2397 = sshll.u32 %s2387, 4
          %s2398 = int_to_ptr.vmem [resolvable:$true] %s2397
          %2403 = dma.vmem_to_hbm [thread:$0]  %s2398, 512, %s2396, %s2384, 128, 128, 8
        $region48: #{attention_forward.1} parent=39 // pred_fallthru
          _
      $region40: #{attention_forward.1} parent=5 // pred_fallthru
        _
      %p2404 = scmp.le.s32.totalorder 2, %s17
      // Predicated region
      $region49: #{attention_forward.1} parent=5 // pred_check
        %p2405 = pneg %p2404
      $region50: #{attention_forward.1} parent=5 // pred_check_branch
        %2407 = sbr.rel (%p2405) target = $region52
      $region51: #{attention_forward.1} parent=5 // pred_region
        %s2408 = ssub.s32 %s17, 2
        // Predicated region
        $region53: #{attention_forward.1} parent=51 // pred_check
          %p2409 = pneg %p156
        $region54: #{attention_forward.1} parent=51 // pred_check_branch
          %2411 = sbr.rel (%p2409) target = $region56
        $region55: #{attention_forward.1} parent=51 // pred_region
          %s2412 = sand.u32 %s141, 1
          %s2413 = scalar_lea.sflag [#allocation4], %s2412
          %s2414 = sand.u32 %s141, 1
          %s2415 = smul.addr %s2414, 32
          %s2416 = scalar_lea.vmem [#allocation5], %s2415
          %2417 = dma.done %s2413, 512
        $region56: #{attention_forward.1} parent=51 // pred_fallthru
          _
      $region52: #{attention_forward.1} parent=5 // pred_fallthru
        _
    $region6: #{attention_forward.1} parent=1 // loop_footer
      %s21 = sadd.s32 1, %s17
    $region7: #{attention_forward.1} parent=1 // loop_footer_branch
      %16 = sbr.rel target = $region3
    $region8: #{attention_forward.1} parent=1 // loop_exit
      _
    %2418 = vsyncpa [#allocation3], 1
    %s2419 = scalar_lea.sflag [#allocation3], 1
    %2420 = vsyncpa %s2419, 1
    %2421 = vsyncpa [#allocation4], 1
    %s2422 = scalar_lea.sflag [#allocation4], 1
    %2423 = vsyncpa %s2422, 1

</llo_original>
